<compile_context>
chip_gen: v7x
topology: tpu7x:2x2x1
jax: 0.10.0
libtpu: 0.0.40
codegen_flags: <defaults>
</compile_context>

<pallas_src>
import numpy as np
import jax
import jax.numpy as jnp
from jax.experimental import pallas as pl
from jax.experimental.pallas import tpu as pltpu

# Problem sizes (consistent with the PyTorch module; 28x28 input so the 14x14 adaptive
# pool is an exact 2x2 average).
N, C, H, W = 2, 8, 28, 28
KH, KW = 5, 5
PAD = 2
OH, OW = 14, 14
HP, WP = H + 2 * PAD, W + 2 * PAD          # 32, 32
CI = C * HP                                # 256  (contraction dim of the per-tap matmul)
NJ = N * WP                                # 64   (rows of the per-tap matmul)


def conv_pool_kernel(x_ref, u_ref, v_ref, b_ref, o_ref):
    """Fused conv(8->1, 5x5, pad=2) + identity-leaky_relu + adaptive-avg-pool(14x14).

    x_ref : VMEM (NJ, CI)      = (64, 256)   zero-padded input, rows=(n, j), cols=(c, i)
    u_ref : VMEM (KW, CI, OH)  = (5, 256, 14)  U[kw,(c,i),oh] = sum_kh w[c,kh,kw]*S_h[kh,i,oh]
    v_ref : VMEM (KW, WP, OW)  = (5, 32, 14)   V[kw,j,ow]     = S_w[kw,j,ow]
    b_ref : SMEM (1, 1)          conv bias (avg-pool of a constant is the constant)
    o_ref : VMEM (N, OH, OW)   = (2, 14, 14)
    """
    x = x_ref[...]                                     # (64, 256)
    bias = b_ref[0, 0]

    acc = [jnp.zeros((OH, OW), dtype=jnp.float32) for _ in range(N)]

    for kw in range(KW):                               # static unrolled: 5 W-direction taps
        u_kw = u_ref[kw]                               # (256, 14)
        v_kw = v_ref[kw]                               # (32, 14)
        # T[(n, j), oh] = sum_{c,i,kh} x_pad[n,c,i,j] * w[c,kh,kw] * S_h[kh,i,oh]
        t_kw = jnp.dot(x, u_kw, preferred_element_type=jnp.float32)   # (64, 14)
        for n in range(N):                             # static unrolled: batch of 2
            t_n = t_kw[n * WP:(n + 1) * WP, :]         # (32, 14)  sublane-aligned slice, rows=j
            # acc[n][oh, ow] += sum_j T[n, j, oh] * S_w[kw, j, ow]   (contract dim 0 of both)
            acc[n] = acc[n] + jax.lax.dot_general(
                t_n, v_kw,
                dimension_numbers=(((0,), (0,)), ((), ())),
                preferred_element_type=jnp.float32)    # (14, 14)

    for n in range(N):
        o_ref[n, :, :] = acc[n] + bias


def adaptive_pool_matrix(in_size, out_size):
    """Row i averages input indices [floor(i*in/out), ceil((i+1)*in/out))."""
    P = np.zeros((out_size, in_size), dtype=np.float32)
    for i in range(out_size):
        s = (i * in_size) // out_size
        e = -((-(i + 1) * in_size) // out_size)        # ceil div
        P[i, s:e] = 1.0 / (e - s)
    return P


def precompute_operators(conv_w, conv_b):
    """Weights-only preprocessing.  Do this ONCE per model, not per forward call."""
    Ph = adaptive_pool_matrix(H, OH)                   # (14, 28)
    Pw = adaptive_pool_matrix(W, OW)                   # (14, 28)

    # S_h[kh, i, oh] = Ph[oh, i - kh] for kh <= i < kh + H (else 0); same for W.
    S_h = np.zeros((KH, HP, OH), dtype=np.float32)
    for kh in range(KH):
        S_h[kh, kh:kh + H, :] = Ph.T
    S_w = np.zeros((KW, WP, OW), dtype=np.float32)
    for kw in range(KW):
        S_w[kw, kw:kw + W, :] = Pw.T

    w = jnp.asarray(conv_w, jnp.float32).reshape(C, KH, KW)
    # U[kw, (c, i), oh] = sum_kh w[c, kh, kw] * S_h[kh, i, oh]   (5, 256, 14) ~ 70 KB
    u_op = jnp.einsum("ckl,kio->lcio", w, jnp.asarray(S_h)).reshape(KW, CI, OH)
    v_op = jnp.asarray(S_w)                            # (5, 32, 14) ~ 9 KB
    b_op = jnp.asarray(conv_b, jnp.float32).reshape(1, 1)
    return u_op, v_op, b_op


@jax.jit
def model_forward(x, u_op, v_op, b_op):
    """x: (N, C, H, W) f32; returns (N, OH*OW) f32 (flatten(1) is inherent)."""
    x_pad = jnp.pad(x.astype(jnp.float32),
                    ((0, 0), (0, 0), (PAD, PAD), (PAD, PAD)))          # (N, C, 32, 32)
    x_r = jnp.transpose(x_pad, (0, 3, 1, 2)).reshape(NJ, CI)           # (64, 256)

    out = pl.pallas_call(
        conv_pool_kernel,
        out_shape=jax.ShapeDtypeStruct((N, OH, OW), jnp.float32),
        in_specs=[
            pl.BlockSpec(memory_space=pltpu.MemorySpace.VMEM),   # x_r
            pl.BlockSpec(memory_space=pltpu.MemorySpace.VMEM),   # U (per-tap fused H operator)
            pl.BlockSpec(memory_space=pltpu.MemorySpace.VMEM),   # V (W-direction pool operator)
            pl.BlockSpec(memory_space=pltpu.MemorySpace.SMEM),   # bias scalar
        ],
        out_specs=pl.BlockSpec(memory_space=pltpu.MemorySpace.VMEM),
    )(x_r, u_op, v_op, b_op)

    return out.reshape(N, OH * OW)


def reference_forward(x, conv_w, conv_b):
    """Pure-JAX reference for correctness checking (matches the PyTorch module)."""
    v1 = jax.lax.conv_general_dilated(
        x, conv_w, window_strides=(1, 1), padding=((PAD, PAD), (PAD, PAD)),
        dimension_numbers=("NCHW", "OIHW", "NCHW"),
    ) + conv_b.reshape(1, 1, 1, 1)
    v4 = jnp.where(v1 > 0, v1, v1 * 1.0)               # leaky_relu(slope=1) == identity
    ph = jnp.asarray(adaptive_pool_matrix(H, OH))
    pw = jnp.asarray(adaptive_pool_matrix(W, OW))
    v5 = jnp.einsum("oh,nchw,pw->ncop", ph, v4, pw)
    return v5.reshape(N, -1)


if __name__ == "__main__":
    key = jax.random.PRNGKey(0)
    k_x, k_w, k_b = jax.random.split(key, 3)

    x = jax.random.normal(k_x, (N, C, H, W), dtype=jnp.float32)

    # Deterministic param init (PyTorch-style uniform(-1/sqrt(fan_in), 1/sqrt(fan_in)))
    fan_in = C * KH * KW
    bound = 1.0 / np.sqrt(fan_in)
    conv_w = jax.random.uniform(k_w, (1, C, KH, KW), jnp.float32, -bound, bound)
    conv_b = jax.random.uniform(k_b, (1,), jnp.float32, -bound, bound)

    # Weights-only operator build happens once, outside the per-call path.
    u_op, v_op, b_op = precompute_operators(conv_w, conv_b)

    out = model_forward(x, u_op, v_op, b_op)
    out = jax.block_until_ready(out)

    ref = reference_forward(x, conv_w, conv_b)
    np.testing.assert_allclose(np.asarray(out), np.asarray(ref), rtol=1e-4, atol=1e-4)

    print("KERNEL_OK")
</pallas_src>

<mosaic_0001>
module attributes {stable_mosaic.version = 11 : i64} {
  func.func @conv_pool_kernel(%arg0: memref<64x256xf32, #tpu.memory_space<vmem>>, %arg1: memref<5x256x14xf32, #tpu.memory_space<vmem>>, %arg2: memref<5x32x14xf32, #tpu.memory_space<vmem>>, %arg3: memref<1x1xf32, #tpu.memory_space<smem>>, %arg4: memref<2x14x14xf32, #tpu.memory_space<vmem>>) attributes {dimension_semantics = [], scalar_prefetch = 0 : i64, scratch_operands = 0 : i64, tpu.core_type = #tpu.core_type<tc>} {
    %c0 = arith.constant 0 : index
    %c0_0 = arith.constant 0 : index
    %0 = vector.load %arg0[%c0, %c0_0] : memref<64x256xf32, #tpu.memory_space<vmem>>, vector<64x256xf32>
    %c0_1 = arith.constant 0 : index
    %c0_2 = arith.constant 0 : index
    %1 = memref.load %arg3[%c0_1, %c0_2] : memref<1x1xf32, #tpu.memory_space<smem>>
    %cst = arith.constant 0.000000e+00 : f32
    %2 = vector.broadcast %cst : f32 to vector<14x14xf32>
    %cst_3 = arith.constant 0.000000e+00 : f32
    %3 = vector.broadcast %cst_3 : f32 to vector<14x14xf32>
    %c0_4 = arith.constant 0 : index
    %c0_5 = arith.constant 0 : index
    %c0_6 = arith.constant 0 : index
    %4 = vector.load %arg1[%c0_4, %c0_5, %c0_6] : memref<5x256x14xf32, #tpu.memory_space<vmem>>, vector<1x256x14xf32>
    %5 = vector.shape_cast %4 : vector<1x256x14xf32> to vector<256x14xf32>
    %c0_7 = arith.constant 0 : index
    %c0_8 = arith.constant 0 : index
    %c0_9 = arith.constant 0 : index
    %6 = vector.load %arg2[%c0_7, %c0_8, %c0_9] : memref<5x32x14xf32, #tpu.memory_space<vmem>>, vector<1x32x14xf32>
    %7 = vector.shape_cast %6 : vector<1x32x14xf32> to vector<32x14xf32>
    %cst_10 = arith.constant dense<0.000000e+00> : vector<64x14xf32>
    %8 = tpu.matmul %0, %5, %cst_10 {dimension_numbers = #tpu.dot_dimension_numbers<[1], [0], [0], [1], [0, 0, 1, 1], [], []>} : vector<64x256xf32>, vector<256x14xf32>, vector<64x14xf32> -> vector<64x14xf32>
    %9 = vector.extract_strided_slice %8 {offsets = [0, 0], sizes = [32, 14], strides = [1, 1]} : vector<64x14xf32> to vector<32x14xf32>
    %cst_11 = arith.constant dense<0.000000e+00> : vector<14x14xf32>
    %10 = tpu.matmul %9, %7, %cst_11 {dimension_numbers = #tpu.dot_dimension_numbers<[0], [0], [1], [1], [0, 1, 1, 1], [], []>} : vector<32x14xf32>, vector<32x14xf32>, vector<14x14xf32> -> vector<14x14xf32>
    %11 = arith.addf %2, %10 : vector<14x14xf32>
    %12 = vector.extract_strided_slice %8 {offsets = [32, 0], sizes = [32, 14], strides = [1, 1]} : vector<64x14xf32> to vector<32x14xf32>
    %cst_12 = arith.constant dense<0.000000e+00> : vector<14x14xf32>
    %13 = tpu.matmul %12, %7, %cst_12 {dimension_numbers = #tpu.dot_dimension_numbers<[0], [0], [1], [1], [0, 1, 1, 1], [], []>} : vector<32x14xf32>, vector<32x14xf32>, vector<14x14xf32> -> vector<14x14xf32>
    %14 = arith.addf %3, %13 : vector<14x14xf32>
    %c1 = arith.constant 1 : index
    %c0_13 = arith.constant 0 : index
    %c0_14 = arith.constant 0 : index
    %15 = vector.load %arg1[%c1, %c0_13, %c0_14] : memref<5x256x14xf32, #tpu.memory_space<vmem>>, vector<1x256x14xf32>
    %16 = vector.shape_cast %15 : vector<1x256x14xf32> to vector<256x14xf32>
    %c1_15 = arith.constant 1 : index
    %c0_16 = arith.constant 0 : index
    %c0_17 = arith.constant 0 : index
    %17 = vector.load %arg2[%c1_15, %c0_16, %c0_17] : memref<5x32x14xf32, #tpu.memory_space<vmem>>, vector<1x32x14xf32>
    %18 = vector.shape_cast %17 : vector<1x32x14xf32> to vector<32x14xf32>
    %cst_18 = arith.constant dense<0.000000e+00> : vector<64x14xf32>
    %19 = tpu.matmul %0, %16, %cst_18 {dimension_numbers = #tpu.dot_dimension_numbers<[1], [0], [0], [1], [0, 0, 1, 1], [], []>} : vector<64x256xf32>, vector<256x14xf32>, vector<64x14xf32> -> vector<64x14xf32>
    %20 = vector.extract_strided_slice %19 {offsets = [0, 0], sizes = [32, 14], strides = [1, 1]} : vector<64x14xf32> to vector<32x14xf32>
    %cst_19 = arith.constant dense<0.000000e+00> : vector<14x14xf32>
    %21 = tpu.matmul %20, %18, %cst_19 {dimension_numbers = #tpu.dot_dimension_numbers<[0], [0], [1], [1], [0, 1, 1, 1], [], []>} : vector<32x14xf32>, vector<32x14xf32>, vector<14x14xf32> -> vector<14x14xf32>
    %22 = arith.addf %11, %21 : vector<14x14xf32>
    %23 = vector.extract_strided_slice %19 {offsets = [32, 0], sizes = [32, 14], strides = [1, 1]} : vector<64x14xf32> to vector<32x14xf32>
    %cst_20 = arith.constant dense<0.000000e+00> : vector<14x14xf32>
    %24 = tpu.matmul %23, %18, %cst_20 {dimension_numbers = #tpu.dot_dimension_numbers<[0], [0], [1], [1], [0, 1, 1, 1], [], []>} : vector<32x14xf32>, vector<32x14xf32>, vector<14x14xf32> -> vector<14x14xf32>
    %25 = arith.addf %14, %24 : vector<14x14xf32>
    %c2 = arith.constant 2 : index
    %c0_21 = arith.constant 0 : index
    %c0_22 = arith.constant 0 : index
    %26 = vector.load %arg1[%c2, %c0_21, %c0_22] : memref<5x256x14xf32, #tpu.memory_space<vmem>>, vector<1x256x14xf32>
    %27 = vector.shape_cast %26 : vector<1x256x14xf32> to vector<256x14xf32>
    %c2_23 = arith.constant 2 : index
    %c0_24 = arith.constant 0 : index
    %c0_25 = arith.constant 0 : index
    %28 = vector.load %arg2[%c2_23, %c0_24, %c0_25] : memref<5x32x14xf32, #tpu.memory_space<vmem>>, vector<1x32x14xf32>
    %29 = vector.shape_cast %28 : vector<1x32x14xf32> to vector<32x14xf32>
    %cst_26 = arith.constant dense<0.000000e+00> : vector<64x14xf32>
    %30 = tpu.matmul %0, %27, %cst_26 {dimension_numbers = #tpu.dot_dimension_numbers<[1], [0], [0], [1], [0, 0, 1, 1], [], []>} : vector<64x256xf32>, vector<256x14xf32>, vector<64x14xf32> -> vector<64x14xf32>
    %31 = vector.extract_strided_slice %30 {offsets = [0, 0], sizes = [32, 14], strides = [1, 1]} : vector<64x14xf32> to vector<32x14xf32>
    %cst_27 = arith.constant dense<0.000000e+00> : vector<14x14xf32>
    %32 = tpu.matmul %31, %29, %cst_27 {dimension_numbers = #tpu.dot_dimension_numbers<[0], [0], [1], [1], [0, 1, 1, 1], [], []>} : vector<32x14xf32>, vector<32x14xf32>, vector<14x14xf32> -> vector<14x14xf32>
    %33 = arith.addf %22, %32 : vector<14x14xf32>
    %34 = vector.extract_strided_slice %30 {offsets = [32, 0], sizes = [32, 14], strides = [1, 1]} : vector<64x14xf32> to vector<32x14xf32>
    %cst_28 = arith.constant dense<0.000000e+00> : vector<14x14xf32>
    %35 = tpu.matmul %34, %29, %cst_28 {dimension_numbers = #tpu.dot_dimension_numbers<[0], [0], [1], [1], [0, 1, 1, 1], [], []>} : vector<32x14xf32>, vector<32x14xf32>, vector<14x14xf32> -> vector<14x14xf32>
    %36 = arith.addf %25, %35 : vector<14x14xf32>
    %c3 = arith.constant 3 : index
    %c0_29 = arith.constant 0 : index
    %c0_30 = arith.constant 0 : index
    %37 = vector.load %arg1[%c3, %c0_29, %c0_30] : memref<5x256x14xf32, #tpu.memory_space<vmem>>, vector<1x256x14xf32>
    %38 = vector.shape_cast %37 : vector<1x256x14xf32> to vector<256x14xf32>
    %c3_31 = arith.constant 3 : index
    %c0_32 = arith.constant 0 : index
    %c0_33 = arith.constant 0 : index
    %39 = vector.load %arg2[%c3_31, %c0_32, %c0_33] : memref<5x32x14xf32, #tpu.memory_space<vmem>>, vector<1x32x14xf32>
    %40 = vector.shape_cast %39 : vector<1x32x14xf32> to vector<32x14xf32>
    %cst_34 = arith.constant dense<0.000000e+00> : vector<64x14xf32>
    %41 = tpu.matmul %0, %38, %cst_34 {dimension_numbers = #tpu.dot_dimension_numbers<[1], [0], [0], [1], [0, 0, 1, 1], [], []>} : vector<64x256xf32>, vector<256x14xf32>, vector<64x14xf32> -> vector<64x14xf32>
    %42 = vector.extract_strided_slice %41 {offsets = [0, 0], sizes = [32, 14], strides = [1, 1]} : vector<64x14xf32> to vector<32x14xf32>
    %cst_35 = arith.constant dense<0.000000e+00> : vector<14x14xf32>
    %43 = tpu.matmul %42, %40, %cst_35 {dimension_numbers = #tpu.dot_dimension_numbers<[0], [0], [1], [1], [0, 1, 1, 1], [], []>} : vector<32x14xf32>, vector<32x14xf32>, vector<14x14xf32> -> vector<14x14xf32>
    %44 = arith.addf %33, %43 : vector<14x14xf32>
    %45 = vector.extract_strided_slice %41 {offsets = [32, 0], sizes = [32, 14], strides = [1, 1]} : vector<64x14xf32> to vector<32x14xf32>
    %cst_36 = arith.constant dense<0.000000e+00> : vector<14x14xf32>
    %46 = tpu.matmul %45, %40, %cst_36 {dimension_numbers = #tpu.dot_dimension_numbers<[0], [0], [1], [1], [0, 1, 1, 1], [], []>} : vector<32x14xf32>, vector<32x14xf32>, vector<14x14xf32> -> vector<14x14xf32>
    %47 = arith.addf %36, %46 : vector<14x14xf32>
    %c4 = arith.constant 4 : index
    %c0_37 = arith.constant 0 : index
    %c0_38 = arith.constant 0 : index
    %48 = vector.load %arg1[%c4, %c0_37, %c0_38] : memref<5x256x14xf32, #tpu.memory_space<vmem>>, vector<1x256x14xf32>
    %49 = vector.shape_cast %48 : vector<1x256x14xf32> to vector<256x14xf32>
    %c4_39 = arith.constant 4 : index
    %c0_40 = arith.constant 0 : index
    %c0_41 = arith.constant 0 : index
    %50 = vector.load %arg2[%c4_39, %c0_40, %c0_41] : memref<5x32x14xf32, #tpu.memory_space<vmem>>, vector<1x32x14xf32>
    %51 = vector.shape_cast %50 : vector<1x32x14xf32> to vector<32x14xf32>
    %cst_42 = arith.constant dense<0.000000e+00> : vector<64x14xf32>
    %52 = tpu.matmul %0, %49, %cst_42 {dimension_numbers = #tpu.dot_dimension_numbers<[1], [0], [0], [1], [0, 0, 1, 1], [], []>} : vector<64x256xf32>, vector<256x14xf32>, vector<64x14xf32> -> vector<64x14xf32>
    %53 = vector.extract_strided_slice %52 {offsets = [0, 0], sizes = [32, 14], strides = [1, 1]} : vector<64x14xf32> to vector<32x14xf32>
    %cst_43 = arith.constant dense<0.000000e+00> : vector<14x14xf32>
    %54 = tpu.matmul %53, %51, %cst_43 {dimension_numbers = #tpu.dot_dimension_numbers<[0], [0], [1], [1], [0, 1, 1, 1], [], []>} : vector<32x14xf32>, vector<32x14xf32>, vector<14x14xf32> -> vector<14x14xf32>
    %55 = arith.addf %44, %54 : vector<14x14xf32>
    %56 = vector.extract_strided_slice %52 {offsets = [32, 0], sizes = [32, 14], strides = [1, 1]} : vector<64x14xf32> to vector<32x14xf32>
    %cst_44 = arith.constant dense<0.000000e+00> : vector<14x14xf32>
    %57 = tpu.matmul %56, %51, %cst_44 {dimension_numbers = #tpu.dot_dimension_numbers<[0], [0], [1], [1], [0, 1, 1, 1], [], []>} : vector<32x14xf32>, vector<32x14xf32>, vector<14x14xf32> -> vector<14x14xf32>
    %58 = arith.addf %47, %57 : vector<14x14xf32>
    %59 = vector.broadcast %1 : f32 to vector<14x14xf32>
    %60 = arith.addf %55, %59 : vector<14x14xf32>
    %c0_45 = arith.constant 0 : index
    %c0_46 = arith.constant 0 : index
    %c0_47 = arith.constant 0 : index
    %61 = vector.load %arg4[%c0_45, %c0_46, %c0_47] : memref<2x14x14xf32, #tpu.memory_space<vmem>>, vector<1x14x14xf32>
    %62 = vector.shape_cast %61 : vector<1x14x14xf32> to vector<14x14xf32>
    %63 = vector.shape_cast %60 : vector<14x14xf32> to vector<1x14x14xf32>
    tpu.vector_store %arg4[%c0_45, %c0_46, %c0_47], %63 {strides = array<i32>} : memref<2x14x14xf32, #tpu.memory_space<vmem>>, vector<1x14x14xf32>,
    %64 = vector.broadcast %1 : f32 to vector<14x14xf32>
    %65 = arith.addf %58, %64 : vector<14x14xf32>
    %c1_48 = arith.constant 1 : index
    %c0_49 = arith.constant 0 : index
    %c0_50 = arith.constant 0 : index
    %66 = vector.load %arg4[%c1_48, %c0_49, %c0_50] : memref<2x14x14xf32, #tpu.memory_space<vmem>>, vector<1x14x14xf32>
    %67 = vector.shape_cast %66 : vector<1x14x14xf32> to vector<14x14xf32>
    %68 = vector.shape_cast %65 : vector<14x14xf32> to vector<1x14x14xf32>
    tpu.vector_store %arg4[%c1_48, %c0_49, %c0_50], %68 {strides = array<i32>} : memref<2x14x14xf32, #tpu.memory_space<vmem>>, vector<1x14x14xf32>,
    return
  }
}

</mosaic_0001>

<llo_original>
// kernel: model_forward.1
$region0: #{model_forward.1}
  #allocation0 [shape = 'u32[]', space=smem, size = 0x4, offset = 0x4, fixed_abs, tag = 'smem constant byte address 0x4 - core index']
  #allocation1 [shape = 'u32[144,128]{1,0:T(1,128)}', space=vmem, size = 0x12000, scoped, tag = 'internal scratch']
  #allocation2 [shape = 'f32[1,1]{1,0:T(1,128)S(6)}', space=smem, size = 0x200, scoped, tag = 'scoped memory for model_forward.1']
  %s0 = inlined_call_operand.vmem [shape: f32[64,256], index: 0, kind: input, shape index: {}]
  %s1 = inlined_call_operand.vmem [shape: f32[5,256,14], index: 1, kind: input, shape index: {}]
  %s2 = inlined_call_operand.vmem [shape: f32[5,32,14], index: 2, kind: input, shape index: {}]
  %s3 = inlined_call_operand.<no memory space> [shape: f32[1,1], index: 3, kind: input, shape index: {}]
  %s4 = inlined_call_operand.vmem [shape: f32[2,14,14], index: 4, kind: output, shape index: {}]
  %s5 = sld [smem:[#allocation0]]
  $region26: #{model_forward.1} parent=0
    _
  %s7 = ssub.s32 1, %s5
  %s8 = scalar_select 0, %s7, %s5
  %9 = sst [smem:[#allocation2]] %s3
  // Predicated region
  $region2: #{model_forward.1} parent=0 // pred_check
    _
  $region3: #{model_forward.1} parent=0 // pred_check_branch
    %11 = sbr.rel (0) target = $region5
  $region4: #{model_forward.1} parent=0 // pred_region
    _
  $region5: #{model_forward.1} parent=0 // pred_fallthru
    _
  // Predicated region
  $region6: #{model_forward.1} parent=0 // pred_check
    _
  $region7: #{model_forward.1} parent=0 // pred_check_branch
    %13 = sbr.rel (0) target = $region9
  $region8: #{model_forward.1} parent=0 // pred_region
    _
  $region9: #{model_forward.1} parent=0 // pred_fallthru
    _
  // Predicated region
  $region10: #{model_forward.1} parent=0 // pred_check
    _
  $region11: #{model_forward.1} parent=0 // pred_check_branch
    %15 = sbr.rel (0) target = $region13
  $region12: #{model_forward.1} parent=0 // pred_region
    _
  $region13: #{model_forward.1} parent=0 // pred_fallthru
    _
  // Predicated region
  $region14: #{model_forward.1} parent=0 // pred_check
    _
  $region15: #{model_forward.1} parent=0 // pred_check_branch
    %17 = sbr.rel (0) target = $region17
  $region16: #{model_forward.1} parent=0 // pred_region
    _
  $region17: #{model_forward.1} parent=0 // pred_fallthru
    _
  %v18 = vld [vmem:[%s0] sm:$0xff]
  %v19 = vld [vmem:[%s0 + $0x8] sm:$0xff]
  %v20 = vld [vmem:[%s0 + $0x10] sm:$0xff]
  %v21 = vld [vmem:[%s0 + $0x18] sm:$0xff]
  %v22 = vld [vmem:[%s0 + $0x20] sm:$0xff]
  %v23 = vld [vmem:[%s0 + $0x28] sm:$0xff]
  %v24 = vld [vmem:[%s0 + $0x30] sm:$0xff]
  %v25 = vld [vmem:[%s0 + $0x38] sm:$0xff]
  %v26 = vld [vmem:[%s0 + $0x40] sm:$0xff]
  %v27 = vld [vmem:[%s0 + $0x48] sm:$0xff]
  %v28 = vld [vmem:[%s0 + $0x50] sm:$0xff]
  %v29 = vld [vmem:[%s0 + $0x58] sm:$0xff]
  %v30 = vld [vmem:[%s0 + $0x60] sm:$0xff]
  %v31 = vld [vmem:[%s0 + $0x68] sm:$0xff]
  %v32 = vld [vmem:[%s0 + $0x70] sm:$0xff]
  %v33 = vld [vmem:[%s0 + $0x78] sm:$0xff]
  %s34 = sld [smem:[#allocation2]]
  %v35 = vld [vmem:[%s1] sm:$0xff]
  %v36 = vld [vmem:[%s1 + $0x8] sm:$0xff]
  %v37 = vld [vmem:[%s1 + $0x10] sm:$0xff]
  %v38 = vld [vmem:[%s1 + $0x18] sm:$0xff]
  %v39 = vld [vmem:[%s1 + $0x20] sm:$0xff]
  %v40 = vld [vmem:[%s1 + $0x28] sm:$0xff]
  %v41 = vld [vmem:[%s1 + $0x30] sm:$0xff]
  %v42 = vld [vmem:[%s1 + $0x38] sm:$0xff]
  %v43 = vld [vmem:[%s1 + $0x40] sm:$0xff]
  %v44 = vld [vmem:[%s1 + $0x48] sm:$0xff]
  %v45 = vld [vmem:[%s1 + $0x50] sm:$0xff]
  %v46 = vld [vmem:[%s1 + $0x58] sm:$0xff]
  %v47 = vld [vmem:[%s1 + $0x60] sm:$0xff]
  %v48 = vld [vmem:[%s1 + $0x68] sm:$0xff]
  %v49 = vld [vmem:[%s1 + $0x70] sm:$0xff]
  %v50 = vld [vmem:[%s1 + $0x78] sm:$0xff]
  %v51 = vld [vmem:[%s1 + $0x80] sm:$0xff]
  %v52 = vld [vmem:[%s1 + $0x88] sm:$0xff]
  %v53 = vld [vmem:[%s1 + $0x90] sm:$0xff]
  %v54 = vld [vmem:[%s1 + $0x98] sm:$0xff]
  %v55 = vld [vmem:[%s1 + $0xa0] sm:$0xff]
  %v56 = vld [vmem:[%s1 + $0xa8] sm:$0xff]
  %v57 = vld [vmem:[%s1 + $0xb0] sm:$0xff]
  %v58 = vld [vmem:[%s1 + $0xb8] sm:$0xff]
  %v59 = vld [vmem:[%s1 + $0xc0] sm:$0xff]
  %v60 = vld [vmem:[%s1 + $0xc8] sm:$0xff]
  %v61 = vld [vmem:[%s1 + $0xd0] sm:$0xff]
  %v62 = vld [vmem:[%s1 + $0xd8] sm:$0xff]
  %v63 = vld [vmem:[%s1 + $0xe0] sm:$0xff]
  %v64 = vld [vmem:[%s1 + $0xe8] sm:$0xff]
  %v65 = vld [vmem:[%s1 + $0xf0] sm:$0xff]
  %v66 = vld [vmem:[%s1 + $0xf8] sm:$0xff]
  %v67 = vld [vmem:[%s2] sm:$0xff]
  %v68 = vld [vmem:[%s2 + $0x8] sm:$0xff]
  %v69 = vld [vmem:[%s2 + $0x10] sm:$0xff]
  %v70 = vld [vmem:[%s2 + $0x18] sm:$0xff]
  %71 = vmatprep.subr.mxu0 0.0
  %72 = vmatpush1.msra.mxu0 %v35
  %73 = vmatprep.subr.mxu0 0.0
  %74 = vmatpush1.msra.mxu0 %v36
  %75 = vmatprep.subr.mxu0 0.0
  %76 = vmatpush1.msra.mxu0 %v37
  %77 = vmatprep.subr.mxu0 0.0
  %78 = vmatpush1.msra.mxu0 %v38
  %79 = vmatprep.subr.mxu0 0.0
  %80 = vmatpush1.msra.mxu0 %v39
  %81 = vmatprep.subr.mxu0 0.0
  %82 = vmatpush1.msra.mxu0 %v40
  %83 = vmatprep.subr.mxu0 0.0
  %84 = vmatpush1.msra.mxu0 %v41
  %85 = vmatprep.subr.mxu0 0.0
  %86 = vmatpush1.msra.mxu0 %v42
  %87 = vmatprep.subr.mxu0 0.0
  %88 = vmatpush1.msra.mxu0 %v43
  %89 = vmatprep.subr.mxu0 0.0
  %90 = vmatpush1.msra.mxu0 %v44
  %91 = vmatprep.subr.mxu0 0.0
  %92 = vmatpush1.msra.mxu0 %v45
  %93 = vmatprep.subr.mxu0 0.0
  %94 = vmatpush1.msra.mxu0 %v46
  %95 = vmatprep.subr.mxu0 0.0
  %96 = vmatpush1.msra.mxu0 %v47
  %97 = vmatprep.subr.mxu0 0.0
  %98 = vmatpush1.msra.mxu0 %v48
  %99 = vmatprep.subr.mxu0 0.0
  %100 = vmatpush1.msra.mxu0 %v49
  %101 = vmatprep.subr.mxu0 0.0
  %102 = vmatpush1.msra.mxu0 %v50
  %103 = vmatprep.subr.mxu0 0.0
  %104 = vmatpush1.msra.mxu0 %v51
  %105 = vmatprep.subr.mxu0 0.0
  %106 = vmatpush1.msra.mxu0 %v52
  %107 = vmatprep.subr.mxu0 0.0
  %108 = vmatpush1.msra.mxu0 %v53
  %109 = vmatprep.subr.mxu0 0.0
  %110 = vmatpush1.msra.mxu0 %v54
  %111 = vmatprep.subr.mxu0 0.0
  %112 = vmatpush1.msra.mxu0 %v55
  %113 = vmatprep.subr.mxu0 0.0
  %114 = vmatpush1.msra.mxu0 %v56
  %115 = vmatprep.subr.mxu0 0.0
  %116 = vmatpush1.msra.mxu0 %v57
  %117 = vmatprep.subr.mxu0 0.0
  %118 = vmatpush1.msra.mxu0 %v58
  %119 = vmatprep.subr.mxu0 0.0
  %120 = vmatpush1.msra.mxu0 %v59
  %121 = vmatprep.subr.mxu0 0.0
  %122 = vmatpush1.msra.mxu0 %v60
  %123 = vmatprep.subr.mxu0 0.0
  %124 = vmatpush1.msra.mxu0 %v61
  %125 = vmatprep.subr.mxu0 0.0
  %126 = vmatpush1.msra.mxu0 %v62
  %127 = vmatprep.subr.mxu0 0.0
  %128 = vmatpush1.msra.mxu0 %v63
  %129 = vmatprep.subr.mxu0 0.0
  %130 = vmatpush1.msra.mxu0 %v64
  %131 = vmatprep.subr.mxu0 0.0
  %132 = vmatpush1.msra.mxu0 %v65
  %133 = vmatprep.subr.mxu0 0.0
  %134 = vmatpush1.msra.mxu0 %v66
  %135 = vmatprep.mubr.f32.mxu0 %v19
  %136 = vmatmul.mubr.f32.gmra.mrb[0].mxu0 %v18
  %v137 = vpop.f32.mrb[0].mxu0
  %v138 = vadd.f32 0.0, %v137
  %v139 = vpop.f32.mrb[0].mxu0
  %140 = vmatprep.mubr.f32.mxu0 %v21
  %141 = vmatmul.mubr.f32.gmra.mrb[0].mxu0 %v20
  %v142 = vpop.f32.mrb[0].mxu0
  %v143 = vadd.f32 0.0, %v142
  %v144 = vpop.f32.mrb[0].mxu0
  %145 = vmatprep.mubr.f32.mxu0 %v23
  %146 = vmatmul.mubr.f32.gmra.mrb[0].mxu0 %v22
  %v147 = vpop.f32.mrb[0].mxu0
  %v148 = vadd.f32 0.0, %v147
  %v149 = vpop.f32.mrb[0].mxu0
  %150 = vmatprep.mubr.f32.mxu0 %v25
  %151 = vmatmul.mubr.f32.gmra.mrb[0].mxu0 %v24
  %v152 = vpop.f32.mrb[0].mxu0
  %v153 = vadd.f32 0.0, %v152
  %v154 = vpop.f32.mrb[0].mxu0
  %155 = vmatprep.mubr.f32.mxu0 %v27
  %156 = vmatmul.mubr.f32.gmra.mrb[0].mxu0 %v26
  %v157 = vpop.f32.mrb[0].mxu0
  %v158 = vadd.f32 0.0, %v157
  %v159 = vpop.f32.mrb[0].mxu0
  %160 = vmatprep.mubr.f32.mxu0 %v29
  %161 = vmatmul.mubr.f32.gmra.mrb[0].mxu0 %v28
  %v162 = vpop.f32.mrb[0].mxu0
  %v163 = vadd.f32 0.0, %v162
  %v164 = vpop.f32.mrb[0].mxu0
  %165 = vmatprep.mubr.f32.mxu0 %v31
  %166 = vmatmul.mubr.f32.gmra.mrb[0].mxu0 %v30
  %v167 = vpop.f32.mrb[0].mxu0
  %v168 = vadd.f32 0.0, %v167
  %v169 = vpop.f32.mrb[0].mxu0
  %170 = vmatprep.mubr.f32.mxu0 %v33
  %171 = vmatmul.mubr.f32.gmra.mrb[0].mxu0 %v32
  %v172 = vpop.f32.mrb[0].mxu0
  %v173 = vadd.f32 0.0, %v172
  %v174 = vpop.f32.mrb[0].mxu0
  %175 = vdwg.mxu0
  %s176 = scalar_lea.vmem %s1, 256
  %v177 = vld [vmem:[%s176] sm:$0xff]
  %v178 = vld [vmem:[%s176 + $0x8] sm:$0xff]
  %v179 = vld [vmem:[%s176 + $0x10] sm:$0xff]
  %v180 = vld [vmem:[%s176 + $0x18] sm:$0xff]
  %v181 = vld [vmem:[%s176 + $0x20] sm:$0xff]
  %v182 = vld [vmem:[%s176 + $0x28] sm:$0xff]
  %v183 = vld [vmem:[%s176 + $0x30] sm:$0xff]
  %v184 = vld [vmem:[%s176 + $0x38] sm:$0xff]
  %v185 = vld [vmem:[%s176 + $0x40] sm:$0xff]
  %v186 = vld [vmem:[%s176 + $0x48] sm:$0xff]
  %v187 = vld [vmem:[%s176 + $0x50] sm:$0xff]
  %v188 = vld [vmem:[%s176 + $0x58] sm:$0xff]
  %v189 = vld [vmem:[%s176 + $0x60] sm:$0xff]
  %v190 = vld [vmem:[%s176 + $0x68] sm:$0xff]
  %v191 = vld [vmem:[%s176 + $0x70] sm:$0xff]
  %v192 = vld [vmem:[%s176 + $0x78] sm:$0xff]
  %v193 = vld [vmem:[%s176 + $0x80] sm:$0xff]
  %v194 = vld [vmem:[%s176 + $0x88] sm:$0xff]
  %v195 = vld [vmem:[%s176 + $0x90] sm:$0xff]
  %v196 = vld [vmem:[%s176 + $0x98] sm:$0xff]
  %v197 = vld [vmem:[%s176 + $0xa0] sm:$0xff]
  %v198 = vld [vmem:[%s176 + $0xa8] sm:$0xff]
  %v199 = vld [vmem:[%s176 + $0xb0] sm:$0xff]
  %v200 = vld [vmem:[%s176 + $0xb8] sm:$0xff]
  %v201 = vld [vmem:[%s176 + $0xc0] sm:$0xff]
  %v202 = vld [vmem:[%s176 + $0xc8] sm:$0xff]
  %v203 = vld [vmem:[%s176 + $0xd0] sm:$0xff]
  %v204 = vld [vmem:[%s176 + $0xd8] sm:$0xff]
  %v205 = vld [vmem:[%s176 + $0xe0] sm:$0xff]
  %v206 = vld [vmem:[%s176 + $0xe8] sm:$0xff]
  %v207 = vld [vmem:[%s176 + $0xf0] sm:$0xff]
  %v208 = vld [vmem:[%s176 + $0xf8] sm:$0xff]
  %s209 = scalar_lea.vmem %s2, 32
  %v210 = vld [vmem:[%s209] sm:$0xff]
  %v211 = vld [vmem:[%s209 + $0x8] sm:$0xff]
  %v212 = vld [vmem:[%s209 + $0x10] sm:$0xff]
  %v213 = vld [vmem:[%s209 + $0x18] sm:$0xff]
  %214 = vmatprep.subr.mxu0 0.0
  %215 = vmatpush1.msra.mxu0 %v177
  %216 = vmatprep.subr.mxu0 0.0
  %217 = vmatpush1.msra.mxu0 %v178
  %218 = vmatprep.subr.mxu0 0.0
  %219 = vmatpush1.msra.mxu0 %v179
  %220 = vmatprep.subr.mxu0 0.0
  %221 = vmatpush1.msra.mxu0 %v180
  %222 = vmatprep.subr.mxu0 0.0
  %223 = vmatpush1.msra.mxu0 %v181
  %224 = vmatprep.subr.mxu0 0.0
  %225 = vmatpush1.msra.mxu0 %v182
  %226 = vmatprep.subr.mxu0 0.0
  %227 = vmatpush1.msra.mxu0 %v183
  %228 = vmatprep.subr.mxu0 0.0
  %229 = vmatpush1.msra.mxu0 %v184
  %230 = vmatprep.subr.mxu0 0.0
  %231 = vmatpush1.msra.mxu0 %v185
  %232 = vmatprep.subr.mxu0 0.0
  %233 = vmatpush1.msra.mxu0 %v186
  %234 = vmatprep.subr.mxu0 0.0
  %235 = vmatpush1.msra.mxu0 %v187
  %236 = vmatprep.subr.mxu0 0.0
  %237 = vmatpush1.msra.mxu0 %v188
  %238 = vmatprep.subr.mxu0 0.0
  %239 = vmatpush1.msra.mxu0 %v189
  %240 = vmatprep.subr.mxu0 0.0
  %241 = vmatpush1.msra.mxu0 %v190
  %242 = vmatprep.subr.mxu0 0.0
  %243 = vmatpush1.msra.mxu0 %v191
  %244 = vmatprep.subr.mxu0 0.0
  %245 = vmatpush1.msra.mxu0 %v192
  %246 = vmatprep.subr.mxu0 0.0
  %247 = vmatpush1.msra.mxu0 %v193
  %248 = vmatprep.subr.mxu0 0.0
  %249 = vmatpush1.msra.mxu0 %v194
  %250 = vmatprep.subr.mxu0 0.0
  %251 = vmatpush1.msra.mxu0 %v195
  %252 = vmatprep.subr.mxu0 0.0
  %253 = vmatpush1.msra.mxu0 %v196
  %254 = vmatprep.subr.mxu0 0.0
  %255 = vmatpush1.msra.mxu0 %v197
  %256 = vmatprep.subr.mxu0 0.0
  %257 = vmatpush1.msra.mxu0 %v198
  %258 = vmatprep.subr.mxu0 0.0
  %259 = vmatpush1.msra.mxu0 %v199
  %260 = vmatprep.subr.mxu0 0.0
  %261 = vmatpush1.msra.mxu0 %v200
  %262 = vmatprep.subr.mxu0 0.0
  %263 = vmatpush1.msra.mxu0 %v201
  %264 = vmatprep.subr.mxu0 0.0
  %265 = vmatpush1.msra.mxu0 %v202
  %266 = vmatprep.subr.mxu0 0.0
  %267 = vmatpush1.msra.mxu0 %v203
  %268 = vmatprep.subr.mxu0 0.0
  %269 = vmatpush1.msra.mxu0 %v204
  %270 = vmatprep.subr.mxu0 0.0
  %271 = vmatpush1.msra.mxu0 %v205
  %272 = vmatprep.subr.mxu0 0.0
  %273 = vmatpush1.msra.mxu0 %v206
  %274 = vmatprep.subr.mxu0 0.0
  %275 = vmatpush1.msra.mxu0 %v207
  %276 = vmatprep.subr.mxu0 0.0
  %277 = vmatpush1.msra.mxu0 %v208
  %278 = vmatprep.mubr.f32.mxu0 %v19
  %279 = vmatmul.mubr.f32.gmra.mrb[0].mxu0 %v18
  %v280 = vpop.f32.mrb[0].mxu0
  %v281 = vadd.f32 0.0, %v280
  %v282 = vpop.f32.mrb[0].mxu0
  %283 = vmatprep.mubr.f32.mxu0 %v21
  %284 = vmatmul.mubr.f32.gmra.mrb[0].mxu0 %v20
  %v285 = vpop.f32.mrb[0].mxu0
  %v286 = vadd.f32 0.0, %v285
  %v287 = vpop.f32.mrb[0].mxu0
  %288 = vmatprep.mubr.f32.mxu0 %v23
  %289 = vmatmul.mubr.f32.gmra.mrb[0].mxu0 %v22
  %v290 = vpop.f32.mrb[0].mxu0
  %v291 = vadd.f32 0.0, %v290
  %v292 = vpop.f32.mrb[0].mxu0
  %293 = vmatprep.mubr.f32.mxu0 %v25
  %294 = vmatmul.mubr.f32.gmra.mrb[0].mxu0 %v24
  %v295 = vpop.f32.mrb[0].mxu0
  %v296 = vadd.f32 0.0, %v295
  %v297 = vpop.f32.mrb[0].mxu0
  %298 = vmatprep.mubr.f32.mxu0 %v27
  %299 = vmatmul.mubr.f32.gmra.mrb[0].mxu0 %v26
  %v300 = vpop.f32.mrb[0].mxu0
  %v301 = vadd.f32 0.0, %v300
  %v302 = vpop.f32.mrb[0].mxu0
  %303 = vmatprep.mubr.f32.mxu0 %v29
  %304 = vmatmul.mubr.f32.gmra.mrb[0].mxu0 %v28
  %v305 = vpop.f32.mrb[0].mxu0
  %v306 = vadd.f32 0.0, %v305
  %v307 = vpop.f32.mrb[0].mxu0
  %308 = vmatprep.mubr.f32.mxu0 %v31
  %309 = vmatmul.mubr.f32.gmra.mrb[0].mxu0 %v30
  %v310 = vpop.f32.mrb[0].mxu0
  %v311 = vadd.f32 0.0, %v310
  %v312 = vpop.f32.mrb[0].mxu0
  %313 = vmatprep.mubr.f32.mxu0 %v33
  %314 = vmatmul.mubr.f32.gmra.mrb[0].mxu0 %v32
  %v315 = vpop.f32.mrb[0].mxu0
  %v316 = vadd.f32 0.0, %v315
  %v317 = vpop.f32.mrb[0].mxu0
  %318 = vdwg.mxu0
  %319 = vxpose.xlu0.b32.start [1/16] %v281, 128
  %320 = vxpose.xlu0.b32.cont [2/16] %v286, 128
  %321 = vxpose.xlu0.b32.cont [3/16] %v291, 128
  %322 = vxpose.xlu0.b32.cont [4/16] %v296, 128
  %323 = vxpose.xlu0.b32.cont [5/16] 0.0, 128
  %324 = vxpose.xlu0.b32.cont [6/16] 0.0, 128
  %325 = vxpose.xlu0.b32.cont [7/16] 0.0, 128
  %326 = vxpose.xlu0.b32.cont [8/16] 0.0, 128
  %327 = vxpose.xlu0.b32.cont [9/16] 0.0, 128
  %328 = vxpose.xlu0.b32.cont [10/16] 0.0, 128
  %329 = vxpose.xlu0.b32.cont [11/16] 0.0, 128
  %330 = vxpose.xlu0.b32.cont [12/16] 0.0, 128
  %331 = vxpose.xlu0.b32.cont [13/16] 0.0, 128
  %332 = vxpose.xlu0.b32.cont [14/16] 0.0, 128
  %333 = vxpose.xlu0.b32.cont [15/16] 0.0, 128
  %334 = vxpose.xlu0.b32.end [16/16] 0.0, 128
  %v335 = vpop.trf.xlu0
  %v336 = vpop.trf.xlu0
  %v337 = vpop.trf.xlu0
  %v338 = vpop.trf.xlu0
  %v339 = vpop.trf.xlu0
  %v340 = vpop.trf.xlu0
  %v341 = vpop.trf.xlu0
  %v342 = vpop.trf.xlu0
  %v343 = vpop.trf.xlu0
  %v344 = vpop.trf.xlu0
  %v345 = vpop.trf.xlu0
  %v346 = vpop.trf.xlu0
  %v347 = vpop.trf.xlu0
  %v348 = vpop.trf.xlu0
  %v349 = vpop.trf.xlu0
  %v350 = vpop.trf.xlu0
  %vm351 = vcmask 261120
  %v353 = vsel %vm351, %v335, 0
  %v356 = vsel %vm351, %v336, 0
  %358 = vmatprep.subr.mxu0 0.0
  %359 = vmatpush1.msra.mxu0 %v210
  %360 = vmatprep.subr.mxu0 0.0
  %361 = vmatpush1.msra.mxu0 %v211
  %362 = vmatprep.subr.mxu0 0.0
  %363 = vmatpush1.msra.mxu0 %v212
  %364 = vmatprep.subr.mxu0 0.0
  %365 = vmatpush1.msra.mxu0 %v213
  %366 = vmatprep.subr.mxu0 0.0
  %367 = vmatpush1.msra.mxu0 0.0
  %368 = vmatprep.subr.mxu0 0.0
  %369 = vmatpush1.msra.mxu0 0.0
  %370 = vmatprep.subr.mxu0 0.0
  %371 = vmatpush1.msra.mxu0 0.0
  %372 = vmatprep.subr.mxu0 0.0
  %373 = vmatpush1.msra.mxu0 0.0
  %374 = vmatprep.subr.mxu0 0.0
  %375 = vmatpush1.msra.mxu0 0.0
  %376 = vmatprep.subr.mxu0 0.0
  %377 = vmatpush1.msra.mxu0 0.0
  %378 = vmatprep.subr.mxu0 0.0
  %379 = vmatpush1.msra.mxu0 0.0
  %380 = vmatprep.subr.mxu0 0.0
  %381 = vmatpush1.msra.mxu0 0.0
  %382 = vmatprep.subr.mxu0 0.0
  %383 = vmatpush1.msra.mxu0 0.0
  %384 = vmatprep.subr.mxu0 0.0
  %385 = vmatpush1.msra.mxu0 0.0
  %386 = vmatprep.subr.mxu0 0.0
  %387 = vmatpush1.msra.mxu0 0.0
  %388 = vmatprep.subr.mxu0 0.0
  %389 = vmatpush1.msra.mxu0 0.0
  %390 = vmatprep.subr.mxu0 0.0
  %391 = vmatpush1.msra.mxu0 0.0
  %392 = vmatprep.subr.mxu0 0.0
  %393 = vmatpush1.msra.mxu0 0.0
  %394 = vmatprep.subr.mxu0 0.0
  %395 = vmatpush1.msra.mxu0 0.0
  %396 = vmatprep.subr.mxu0 0.0
  %397 = vmatpush1.msra.mxu0 0.0
  %398 = vmatprep.subr.mxu0 0.0
  %399 = vmatpush1.msra.mxu0 0.0
  %400 = vmatprep.subr.mxu0 0.0
  %401 = vmatpush1.msra.mxu0 0.0
  %402 = vmatprep.subr.mxu0 0.0
  %403 = vmatpush1.msra.mxu0 0.0
  %404 = vmatprep.subr.mxu0 0.0
  %405 = vmatpush1.msra.mxu0 0.0
  %406 = vmatprep.subr.mxu0 0.0
  %407 = vmatpush1.msra.mxu0 0.0
  %408 = vmatprep.subr.mxu0 0.0
  %409 = vmatpush1.msra.mxu0 0.0
  %410 = vmatprep.subr.mxu0 0.0
  %411 = vmatpush1.msra.mxu0 0.0
  %412 = vmatprep.subr.mxu0 0.0
  %413 = vmatpush1.msra.mxu0 0.0
  %414 = vmatprep.subr.mxu0 0.0
  %415 = vmatpush1.msra.mxu0 0.0
  %416 = vmatprep.subr.mxu0 0.0
  %417 = vmatpush1.msra.mxu0 0.0
  %418 = vmatprep.subr.mxu0 0.0
  %419 = vmatpush1.msra.mxu0 0.0
  %420 = vmatprep.subr.mxu0 0.0
  %421 = vmatpush1.msra.mxu0 0.0
  %422 = vmatprep.mubr.f32.mxu0 0.0
  %423 = vmatmul.mubr.f32.gmra.mrb[0].mxu0 %v353
  %v424 = vpop.f32.mrb[0].mxu0
  %v425 = vadd.f32 0.0, %v424
  %v426 = vpop.f32.mrb[0].mxu0
  %427 = vmatprep.mubr.f32.mxu0 0.0
  %428 = vmatmul.mubr.f32.gmra.mrb[0].mxu0 %v356
  %v429 = vpop.f32.mrb[0].mxu0
  %v430 = vadd.f32 0.0, %v429
  %v431 = vpop.f32.mrb[0].mxu0
  %432 = vdwg.mxu0
  %433 = vxpose.xlu0.b32.start [1/16] %v138, 128
  %434 = vxpose.xlu0.b32.cont [2/16] %v143, 128
  %435 = vxpose.xlu0.b32.cont [3/16] %v148, 128
  %436 = vxpose.xlu0.b32.cont [4/16] %v153, 128
  %437 = vxpose.xlu0.b32.cont [5/16] 0.0, 128
  %438 = vxpose.xlu0.b32.cont [6/16] 0.0, 128
  %439 = vxpose.xlu0.b32.cont [7/16] 0.0, 128
  %440 = vxpose.xlu0.b32.cont [8/16] 0.0, 128
  %441 = vxpose.xlu0.b32.cont [9/16] 0.0, 128
  %442 = vxpose.xlu0.b32.cont [10/16] 0.0, 128
  %443 = vxpose.xlu0.b32.cont [11/16] 0.0, 128
  %444 = vxpose.xlu0.b32.cont [12/16] 0.0, 128
  %445 = vxpose.xlu0.b32.cont [13/16] 0.0, 128
  %446 = vxpose.xlu0.b32.cont [14/16] 0.0, 128
  %447 = vxpose.xlu0.b32.cont [15/16] 0.0, 128
  %448 = vxpose.xlu0.b32.end [16/16] 0.0, 128
  %v449 = vpop.trf.xlu0
  %v450 = vpop.trf.xlu0
  %v451 = vpop.trf.xlu0
  %v452 = vpop.trf.xlu0
  %v453 = vpop.trf.xlu0
  %v454 = vpop.trf.xlu0
  %v455 = vpop.trf.xlu0
  %v456 = vpop.trf.xlu0
  %v457 = vpop.trf.xlu0
  %v458 = vpop.trf.xlu0
  %v459 = vpop.trf.xlu0
  %v460 = vpop.trf.xlu0
  %v461 = vpop.trf.xlu0
  %v462 = vpop.trf.xlu0
  %v463 = vpop.trf.xlu0
  %v464 = vpop.trf.xlu0
  %v466 = vsel %vm351, %v449, 0
  %v469 = vsel %vm351, %v450, 0
  %471 = vmatprep.subr.mxu0 0.0
  %472 = vmatpush1.msra.mxu0 %v67
  %473 = vmatprep.subr.mxu0 0.0
  %474 = vmatpush1.msra.mxu0 %v68
  %475 = vmatprep.subr.mxu0 0.0
  %476 = vmatpush1.msra.mxu0 %v69
  %477 = vmatprep.subr.mxu0 0.0
  %478 = vmatpush1.msra.mxu0 %v70
  %479 = vmatprep.subr.mxu0 0.0
  %480 = vmatpush1.msra.mxu0 0.0
  %481 = vmatprep.subr.mxu0 0.0
  %482 = vmatpush1.msra.mxu0 0.0
  %483 = vmatprep.subr.mxu0 0.0
  %484 = vmatpush1.msra.mxu0 0.0
  %485 = vmatprep.subr.mxu0 0.0
  %486 = vmatpush1.msra.mxu0 0.0
  %487 = vmatprep.subr.mxu0 0.0
  %488 = vmatpush1.msra.mxu0 0.0
  %489 = vmatprep.subr.mxu0 0.0
  %490 = vmatpush1.msra.mxu0 0.0
  %491 = vmatprep.subr.mxu0 0.0
  %492 = vmatpush1.msra.mxu0 0.0
  %493 = vmatprep.subr.mxu0 0.0
  %494 = vmatpush1.msra.mxu0 0.0
  %495 = vmatprep.subr.mxu0 0.0
  %496 = vmatpush1.msra.mxu0 0.0
  %497 = vmatprep.subr.mxu0 0.0
  %498 = vmatpush1.msra.mxu0 0.0
  %499 = vmatprep.subr.mxu0 0.0
  %500 = vmatpush1.msra.mxu0 0.0
  %501 = vmatprep.subr.mxu0 0.0
  %502 = vmatpush1.msra.mxu0 0.0
  %503 = vmatprep.subr.mxu0 0.0
  %504 = vmatpush1.msra.mxu0 0.0
  %505 = vmatprep.subr.mxu0 0.0
  %506 = vmatpush1.msra.mxu0 0.0
  %507 = vmatprep.subr.mxu0 0.0
  %508 = vmatpush1.msra.mxu0 0.0
  %509 = vmatprep.subr.mxu0 0.0
  %510 = vmatpush1.msra.mxu0 0.0
  %511 = vmatprep.subr.mxu0 0.0
  %512 = vmatpush1.msra.mxu0 0.0
  %513 = vmatprep.subr.mxu0 0.0
  %514 = vmatpush1.msra.mxu0 0.0
  %515 = vmatprep.subr.mxu0 0.0
  %516 = vmatpush1.msra.mxu0 0.0
  %517 = vmatprep.subr.mxu0 0.0
  %518 = vmatpush1.msra.mxu0 0.0
  %519 = vmatprep.subr.mxu0 0.0
  %520 = vmatpush1.msra.mxu0 0.0
  %521 = vmatprep.subr.mxu0 0.0
  %522 = vmatpush1.msra.mxu0 0.0
  %523 = vmatprep.subr.mxu0 0.0
  %524 = vmatpush1.msra.mxu0 0.0
  %525 = vmatprep.subr.mxu0 0.0
  %526 = vmatpush1.msra.mxu0 0.0
  %527 = vmatprep.subr.mxu0 0.0
  %528 = vmatpush1.msra.mxu0 0.0
  %529 = vmatprep.subr.mxu0 0.0
  %530 = vmatpush1.msra.mxu0 0.0
  %531 = vmatprep.subr.mxu0 0.0
  %532 = vmatpush1.msra.mxu0 0.0
  %533 = vmatprep.subr.mxu0 0.0
  %534 = vmatpush1.msra.mxu0 0.0
  %535 = vmatprep.mubr.f32.mxu0 0.0
  %536 = vmatmul.mubr.f32.gmra.mrb[0].mxu0 %v466
  %v537 = vpop.f32.mrb[0].mxu0
  %v538 = vadd.f32 %v425, %v537
  %v539 = vpop.f32.mrb[0].mxu0
  %540 = vmatprep.mubr.f32.mxu0 0.0
  %541 = vmatmul.mubr.f32.gmra.mrb[0].mxu0 %v469
  %v542 = vpop.f32.mrb[0].mxu0
  %v543 = vadd.f32 %v430, %v542
  %v544 = vpop.f32.mrb[0].mxu0
  %545 = vdwg.mxu0
  %546 = vxpose.xlu0.b32.start [1/16] %v301, 128
  %547 = vxpose.xlu0.b32.cont [2/16] %v306, 128
  %548 = vxpose.xlu0.b32.cont [3/16] %v311, 128
  %549 = vxpose.xlu0.b32.cont [4/16] %v316, 128
  %550 = vxpose.xlu0.b32.cont [5/16] 0.0, 128
  %551 = vxpose.xlu0.b32.cont [6/16] 0.0, 128
  %552 = vxpose.xlu0.b32.cont [7/16] 0.0, 128
  %553 = vxpose.xlu0.b32.cont [8/16] 0.0, 128
  %554 = vxpose.xlu0.b32.cont [9/16] 0.0, 128
  %555 = vxpose.xlu0.b32.cont [10/16] 0.0, 128
  %556 = vxpose.xlu0.b32.cont [11/16] 0.0, 128
  %557 = vxpose.xlu0.b32.cont [12/16] 0.0, 128
  %558 = vxpose.xlu0.b32.cont [13/16] 0.0, 128
  %559 = vxpose.xlu0.b32.cont [14/16] 0.0, 128
  %560 = vxpose.xlu0.b32.cont [15/16] 0.0, 128
  %561 = vxpose.xlu0.b32.end [16/16] 0.0, 128
  %v562 = vpop.trf.xlu0
  %v563 = vpop.trf.xlu0
  %v564 = vpop.trf.xlu0
  %v565 = vpop.trf.xlu0
  %v566 = vpop.trf.xlu0
  %v567 = vpop.trf.xlu0
  %v568 = vpop.trf.xlu0
  %v569 = vpop.trf.xlu0
  %v570 = vpop.trf.xlu0
  %v571 = vpop.trf.xlu0
  %v572 = vpop.trf.xlu0
  %v573 = vpop.trf.xlu0
  %v574 = vpop.trf.xlu0
  %v575 = vpop.trf.xlu0
  %v576 = vpop.trf.xlu0
  %v577 = vpop.trf.xlu0
  %v579 = vsel %vm351, %v562, 0
  %v582 = vsel %vm351, %v563, 0
  %584 = vmatprep.subr.mxu0 0.0
  %585 = vmatpush1.msra.mxu0 %v210
  %586 = vmatprep.subr.mxu0 0.0
  %587 = vmatpush1.msra.mxu0 %v211
  %588 = vmatprep.subr.mxu0 0.0
  %589 = vmatpush1.msra.mxu0 %v212
  %590 = vmatprep.subr.mxu0 0.0
  %591 = vmatpush1.msra.mxu0 %v213
  %592 = vmatprep.subr.mxu0 0.0
  %593 = vmatpush1.msra.mxu0 0.0
  %594 = vmatprep.subr.mxu0 0.0
  %595 = vmatpush1.msra.mxu0 0.0
  %596 = vmatprep.subr.mxu0 0.0
  %597 = vmatpush1.msra.mxu0 0.0
  %598 = vmatprep.subr.mxu0 0.0
  %599 = vmatpush1.msra.mxu0 0.0
  %600 = vmatprep.subr.mxu0 0.0
  %601 = vmatpush1.msra.mxu0 0.0
  %602 = vmatprep.subr.mxu0 0.0
  %603 = vmatpush1.msra.mxu0 0.0
  %604 = vmatprep.subr.mxu0 0.0
  %605 = vmatpush1.msra.mxu0 0.0
  %606 = vmatprep.subr.mxu0 0.0
  %607 = vmatpush1.msra.mxu0 0.0
  %608 = vmatprep.subr.mxu0 0.0
  %609 = vmatpush1.msra.mxu0 0.0
  %610 = vmatprep.subr.mxu0 0.0
  %611 = vmatpush1.msra.mxu0 0.0
  %612 = vmatprep.subr.mxu0 0.0
  %613 = vmatpush1.msra.mxu0 0.0
  %614 = vmatprep.subr.mxu0 0.0
  %615 = vmatpush1.msra.mxu0 0.0
  %616 = vmatprep.subr.mxu0 0.0
  %617 = vmatpush1.msra.mxu0 0.0
  %618 = vmatprep.subr.mxu0 0.0
  %619 = vmatpush1.msra.mxu0 0.0
  %620 = vmatprep.subr.mxu0 0.0
  %621 = vmatpush1.msra.mxu0 0.0
  %622 = vmatprep.subr.mxu0 0.0
  %623 = vmatpush1.msra.mxu0 0.0
  %624 = vmatprep.subr.mxu0 0.0
  %625 = vmatpush1.msra.mxu0 0.0
  %626 = vmatprep.subr.mxu0 0.0
  %627 = vmatpush1.msra.mxu0 0.0
  %628 = vmatprep.subr.mxu0 0.0
  %629 = vmatpush1.msra.mxu0 0.0
  %630 = vmatprep.subr.mxu0 0.0
  %631 = vmatpush1.msra.mxu0 0.0
  %632 = vmatprep.subr.mxu0 0.0
  %633 = vmatpush1.msra.mxu0 0.0
  %634 = vmatprep.subr.mxu0 0.0
  %635 = vmatpush1.msra.mxu0 0.0
  %636 = vmatprep.subr.mxu0 0.0
  %637 = vmatpush1.msra.mxu0 0.0
  %638 = vmatprep.subr.mxu0 0.0
  %639 = vmatpush1.msra.mxu0 0.0
  %640 = vmatprep.subr.mxu0 0.0
  %641 = vmatpush1.msra.mxu0 0.0
  %642 = vmatprep.subr.mxu0 0.0
  %643 = vmatpush1.msra.mxu0 0.0
  %644 = vmatprep.subr.mxu0 0.0
  %645 = vmatpush1.msra.mxu0 0.0
  %646 = vmatprep.subr.mxu0 0.0
  %647 = vmatpush1.msra.mxu0 0.0
  %648 = vmatprep.mubr.f32.mxu0 0.0
  %649 = vmatmul.mubr.f32.gmra.mrb[0].mxu0 %v579
  %v650 = vpop.f32.mrb[0].mxu0
  %v651 = vadd.f32 0.0, %v650
  %v652 = vpop.f32.mrb[0].mxu0
  %653 = vmatprep.mubr.f32.mxu0 0.0
  %654 = vmatmul.mubr.f32.gmra.mrb[0].mxu0 %v582
  %v655 = vpop.f32.mrb[0].mxu0
  %v656 = vadd.f32 0.0, %v655
  %v657 = vpop.f32.mrb[0].mxu0
  %658 = vdwg.mxu0
  %659 = vxpose.xlu0.b32.start [1/16] %v158, 128
  %660 = vxpose.xlu0.b32.cont [2/16] %v163, 128
  %661 = vxpose.xlu0.b32.cont [3/16] %v168, 128
  %662 = vxpose.xlu0.b32.cont [4/16] %v173, 128
  %663 = vxpose.xlu0.b32.cont [5/16] 0.0, 128
  %664 = vxpose.xlu0.b32.cont [6/16] 0.0, 128
  %665 = vxpose.xlu0.b32.cont [7/16] 0.0, 128
  %666 = vxpose.xlu0.b32.cont [8/16] 0.0, 128
  %667 = vxpose.xlu0.b32.cont [9/16] 0.0, 128
  %668 = vxpose.xlu0.b32.cont [10/16] 0.0, 128
  %669 = vxpose.xlu0.b32.cont [11/16] 0.0, 128
  %670 = vxpose.xlu0.b32.cont [12/16] 0.0, 128
  %671 = vxpose.xlu0.b32.cont [13/16] 0.0, 128
  %672 = vxpose.xlu0.b32.cont [14/16] 0.0, 128
  %673 = vxpose.xlu0.b32.cont [15/16] 0.0, 128
  %674 = vxpose.xlu0.b32.end [16/16] 0.0, 128
  %v675 = vpop.trf.xlu0
  %v676 = vpop.trf.xlu0
  %v677 = vpop.trf.xlu0
  %v678 = vpop.trf.xlu0
  %v679 = vpop.trf.xlu0
  %v680 = vpop.trf.xlu0
  %v681 = vpop.trf.xlu0
  %v682 = vpop.trf.xlu0
  %v683 = vpop.trf.xlu0
  %v684 = vpop.trf.xlu0
  %v685 = vpop.trf.xlu0
  %v686 = vpop.trf.xlu0
  %v687 = vpop.trf.xlu0
  %v688 = vpop.trf.xlu0
  %v689 = vpop.trf.xlu0
  %v690 = vpop.trf.xlu0
  %v692 = vsel %vm351, %v675, 0
  %v695 = vsel %vm351, %v676, 0
  %697 = vmatprep.subr.mxu0 0.0
  %698 = vmatpush1.msra.mxu0 %v67
  %699 = vmatprep.subr.mxu0 0.0
  %700 = vmatpush1.msra.mxu0 %v68
  %701 = vmatprep.subr.mxu0 0.0
  %702 = vmatpush1.msra.mxu0 %v69
  %703 = vmatprep.subr.mxu0 0.0
  %704 = vmatpush1.msra.mxu0 %v70
  %705 = vmatprep.subr.mxu0 0.0
  %706 = vmatpush1.msra.mxu0 0.0
  %707 = vmatprep.subr.mxu0 0.0
  %708 = vmatpush1.msra.mxu0 0.0
  %709 = vmatprep.subr.mxu0 0.0
  %710 = vmatpush1.msra.mxu0 0.0
  %711 = vmatprep.subr.mxu0 0.0
  %712 = vmatpush1.msra.mxu0 0.0
  %713 = vmatprep.subr.mxu0 0.0
  %714 = vmatpush1.msra.mxu0 0.0
  %715 = vmatprep.subr.mxu0 0.0
  %716 = vmatpush1.msra.mxu0 0.0
  %717 = vmatprep.subr.mxu0 0.0
  %718 = vmatpush1.msra.mxu0 0.0
  %719 = vmatprep.subr.mxu0 0.0
  %720 = vmatpush1.msra.mxu0 0.0
  %721 = vmatprep.subr.mxu0 0.0
  %722 = vmatpush1.msra.mxu0 0.0
  %723 = vmatprep.subr.mxu0 0.0
  %724 = vmatpush1.msra.mxu0 0.0
  %725 = vmatprep.subr.mxu0 0.0
  %726 = vmatpush1.msra.mxu0 0.0
  %727 = vmatprep.subr.mxu0 0.0
  %728 = vmatpush1.msra.mxu0 0.0
  %729 = vmatprep.subr.mxu0 0.0
  %730 = vmatpush1.msra.mxu0 0.0
  %731 = vmatprep.subr.mxu0 0.0
  %732 = vmatpush1.msra.mxu0 0.0
  %733 = vmatprep.subr.mxu0 0.0
  %734 = vmatpush1.msra.mxu0 0.0
  %735 = vmatprep.subr.mxu0 0.0
  %736 = vmatpush1.msra.mxu0 0.0
  %737 = vmatprep.subr.mxu0 0.0
  %738 = vmatpush1.msra.mxu0 0.0
  %739 = vmatprep.subr.mxu0 0.0
  %740 = vmatpush1.msra.mxu0 0.0
  %741 = vmatprep.subr.mxu0 0.0
  %742 = vmatpush1.msra.mxu0 0.0
  %743 = vmatprep.subr.mxu0 0.0
  %744 = vmatpush1.msra.mxu0 0.0
  %745 = vmatprep.subr.mxu0 0.0
  %746 = vmatpush1.msra.mxu0 0.0
  %747 = vmatprep.subr.mxu0 0.0
  %748 = vmatpush1.msra.mxu0 0.0
  %749 = vmatprep.subr.mxu0 0.0
  %750 = vmatpush1.msra.mxu0 0.0
  %751 = vmatprep.subr.mxu0 0.0
  %752 = vmatpush1.msra.mxu0 0.0
  %753 = vmatprep.subr.mxu0 0.0
  %754 = vmatpush1.msra.mxu0 0.0
  %755 = vmatprep.subr.mxu0 0.0
  %756 = vmatpush1.msra.mxu0 0.0
  %757 = vmatprep.subr.mxu0 0.0
  %758 = vmatpush1.msra.mxu0 0.0
  %759 = vmatprep.subr.mxu0 0.0
  %760 = vmatpush1.msra.mxu0 0.0
  %761 = vmatprep.mubr.f32.mxu0 0.0
  %762 = vmatmul.mubr.f32.gmra.mrb[0].mxu0 %v692
  %v763 = vpop.f32.mrb[0].mxu0
  %v764 = vadd.f32 %v651, %v763
  %v765 = vpop.f32.mrb[0].mxu0
  %766 = vmatprep.mubr.f32.mxu0 0.0
  %767 = vmatmul.mubr.f32.gmra.mrb[0].mxu0 %v695
  %v768 = vpop.f32.mrb[0].mxu0
  %v769 = vadd.f32 %v656, %v768
  %v770 = vpop.f32.mrb[0].mxu0
  %771 = vdwg.mxu0
  %s772 = scalar_lea.vmem %s1, 512
  %v773 = vld [vmem:[%s772] sm:$0xff]
  %v774 = vld [vmem:[%s772 + $0x8] sm:$0xff]
  %v775 = vld [vmem:[%s772 + $0x10] sm:$0xff]
  %v776 = vld [vmem:[%s772 + $0x18] sm:$0xff]
  %v777 = vld [vmem:[%s772 + $0x20] sm:$0xff]
  %v778 = vld [vmem:[%s772 + $0x28] sm:$0xff]
  %v779 = vld [vmem:[%s772 + $0x30] sm:$0xff]
  %v780 = vld [vmem:[%s772 + $0x38] sm:$0xff]
  %v781 = vld [vmem:[%s772 + $0x40] sm:$0xff]
  %v782 = vld [vmem:[%s772 + $0x48] sm:$0xff]
  %v783 = vld [vmem:[%s772 + $0x50] sm:$0xff]
  %v784 = vld [vmem:[%s772 + $0x58] sm:$0xff]
  %v785 = vld [vmem:[%s772 + $0x60] sm:$0xff]
  %v786 = vld [vmem:[%s772 + $0x68] sm:$0xff]
  %v787 = vld [vmem:[%s772 + $0x70] sm:$0xff]
  %v788 = vld [vmem:[%s772 + $0x78] sm:$0xff]
  %v789 = vld [vmem:[%s772 + $0x80] sm:$0xff]
  %v790 = vld [vmem:[%s772 + $0x88] sm:$0xff]
  %v791 = vld [vmem:[%s772 + $0x90] sm:$0xff]
  %v792 = vld [vmem:[%s772 + $0x98] sm:$0xff]
  %v793 = vld [vmem:[%s772 + $0xa0] sm:$0xff]
  %v794 = vld [vmem:[%s772 + $0xa8] sm:$0xff]
  %v795 = vld [vmem:[%s772 + $0xb0] sm:$0xff]
  %v796 = vld [vmem:[%s772 + $0xb8] sm:$0xff]
  %v797 = vld [vmem:[%s772 + $0xc0] sm:$0xff]
  %v798 = vld [vmem:[%s772 + $0xc8] sm:$0xff]
  %v799 = vld [vmem:[%s772 + $0xd0] sm:$0xff]
  %v800 = vld [vmem:[%s772 + $0xd8] sm:$0xff]
  %v801 = vld [vmem:[%s772 + $0xe0] sm:$0xff]
  %v802 = vld [vmem:[%s772 + $0xe8] sm:$0xff]
  %v803 = vld [vmem:[%s772 + $0xf0] sm:$0xff]
  %v804 = vld [vmem:[%s772 + $0xf8] sm:$0xff]
  %s805 = scalar_lea.vmem %s2, 64
  %v806 = vld [vmem:[%s805] sm:$0xff]
  %v807 = vld [vmem:[%s805 + $0x8] sm:$0xff]
  %v808 = vld [vmem:[%s805 + $0x10] sm:$0xff]
  %v809 = vld [vmem:[%s805 + $0x18] sm:$0xff]
  %810 = vmatprep.subr.mxu0 0.0
  %811 = vmatpush1.msra.mxu0 %v773
  %812 = vmatprep.subr.mxu0 0.0
  %813 = vmatpush1.msra.mxu0 %v774
  %814 = vmatprep.subr.mxu0 0.0
  %815 = vmatpush1.msra.mxu0 %v775
  %816 = vmatprep.subr.mxu0 0.0
  %817 = vmatpush1.msra.mxu0 %v776
  %818 = vmatprep.subr.mxu0 0.0
  %819 = vmatpush1.msra.mxu0 %v777
  %820 = vmatprep.subr.mxu0 0.0
  %821 = vmatpush1.msra.mxu0 %v778
  %822 = vmatprep.subr.mxu0 0.0
  %823 = vmatpush1.msra.mxu0 %v779
  %824 = vmatprep.subr.mxu0 0.0
  %825 = vmatpush1.msra.mxu0 %v780
  %826 = vmatprep.subr.mxu0 0.0
  %827 = vmatpush1.msra.mxu0 %v781
  %828 = vmatprep.subr.mxu0 0.0
  %829 = vmatpush1.msra.mxu0 %v782
  %830 = vmatprep.subr.mxu0 0.0
  %831 = vmatpush1.msra.mxu0 %v783
  %832 = vmatprep.subr.mxu0 0.0
  %833 = vmatpush1.msra.mxu0 %v784
  %834 = vmatprep.subr.mxu0 0.0
  %835 = vmatpush1.msra.mxu0 %v785
  %836 = vmatprep.subr.mxu0 0.0
  %837 = vmatpush1.msra.mxu0 %v786
  %838 = vmatprep.subr.mxu0 0.0
  %839 = vmatpush1.msra.mxu0 %v787
  %840 = vmatprep.subr.mxu0 0.0
  %841 = vmatpush1.msra.mxu0 %v788
  %842 = vmatprep.subr.mxu0 0.0
  %843 = vmatpush1.msra.mxu0 %v789
  %844 = vmatprep.subr.mxu0 0.0
  %845 = vmatpush1.msra.mxu0 %v790
  %846 = vmatprep.subr.mxu0 0.0
  %847 = vmatpush1.msra.mxu0 %v791
  %848 = vmatprep.subr.mxu0 0.0
  %849 = vmatpush1.msra.mxu0 %v792
  %850 = vmatprep.subr.mxu0 0.0
  %851 = vmatpush1.msra.mxu0 %v793
  %852 = vmatprep.subr.mxu0 0.0
  %853 = vmatpush1.msra.mxu0 %v794
  %854 = vmatprep.subr.mxu0 0.0
  %855 = vmatpush1.msra.mxu0 %v795
  %856 = vmatprep.subr.mxu0 0.0
  %857 = vmatpush1.msra.mxu0 %v796
  %858 = vmatprep.subr.mxu0 0.0
  %859 = vmatpush1.msra.mxu0 %v797
  %860 = vmatprep.subr.mxu0 0.0
  %861 = vmatpush1.msra.mxu0 %v798
  %862 = vmatprep.subr.mxu0 0.0
  %863 = vmatpush1.msra.mxu0 %v799
  %864 = vmatprep.subr.mxu0 0.0
  %865 = vmatpush1.msra.mxu0 %v800
  %866 = vmatprep.subr.mxu0 0.0
  %867 = vmatpush1.msra.mxu0 %v801
  %868 = vmatprep.subr.mxu0 0.0
  %869 = vmatpush1.msra.mxu0 %v802
  %870 = vmatprep.subr.mxu0 0.0
  %871 = vmatpush1.msra.mxu0 %v803
  %872 = vmatprep.subr.mxu0 0.0
  %873 = vmatpush1.msra.mxu0 %v804
  %874 = vmatprep.mubr.f32.mxu0 %v19
  %875 = vmatmul.mubr.f32.gmra.mrb[0].mxu0 %v18
  %v876 = vpop.f32.mrb[0].mxu0
  %v877 = vadd.f32 0.0, %v876
  %v878 = vpop.f32.mrb[0].mxu0
  %879 = vmatprep.mubr.f32.mxu0 %v21
  %880 = vmatmul.mubr.f32.gmra.mrb[0].mxu0 %v20
  %v881 = vpop.f32.mrb[0].mxu0
  %v882 = vadd.f32 0.0, %v881
  %v883 = vpop.f32.mrb[0].mxu0
  %884 = vmatprep.mubr.f32.mxu0 %v23
  %885 = vmatmul.mubr.f32.gmra.mrb[0].mxu0 %v22
  %v886 = vpop.f32.mrb[0].mxu0
  %v887 = vadd.f32 0.0, %v886
  %v888 = vpop.f32.mrb[0].mxu0
  %889 = vmatprep.mubr.f32.mxu0 %v25
  %890 = vmatmul.mubr.f32.gmra.mrb[0].mxu0 %v24
  %v891 = vpop.f32.mrb[0].mxu0
  %v892 = vadd.f32 0.0, %v891
  %v893 = vpop.f32.mrb[0].mxu0
  %894 = vmatprep.mubr.f32.mxu0 %v27
  %895 = vmatmul.mubr.f32.gmra.mrb[0].mxu0 %v26
  %v896 = vpop.f32.mrb[0].mxu0
  %v897 = vadd.f32 0.0, %v896
  %v898 = vpop.f32.mrb[0].mxu0
  %899 = vmatprep.mubr.f32.mxu0 %v29
  %900 = vmatmul.mubr.f32.gmra.mrb[0].mxu0 %v28
  %v901 = vpop.f32.mrb[0].mxu0
  %v902 = vadd.f32 0.0, %v901
  %v903 = vpop.f32.mrb[0].mxu0
  %904 = vmatprep.mubr.f32.mxu0 %v31
  %905 = vmatmul.mubr.f32.gmra.mrb[0].mxu0 %v30
  %v906 = vpop.f32.mrb[0].mxu0
  %v907 = vadd.f32 0.0, %v906
  %v908 = vpop.f32.mrb[0].mxu0
  %909 = vmatprep.mubr.f32.mxu0 %v33
  %910 = vmatmul.mubr.f32.gmra.mrb[0].mxu0 %v32
  %v911 = vpop.f32.mrb[0].mxu0
  %v912 = vadd.f32 0.0, %v911
  %v913 = vpop.f32.mrb[0].mxu0
  %914 = vdwg.mxu0
  %915 = vxpose.xlu0.b32.start [1/16] %v877, 128
  %916 = vxpose.xlu0.b32.cont [2/16] %v882, 128
  %917 = vxpose.xlu0.b32.cont [3/16] %v887, 128
  %918 = vxpose.xlu0.b32.cont [4/16] %v892, 128
  %919 = vxpose.xlu0.b32.cont [5/16] 0.0, 128
  %920 = vxpose.xlu0.b32.cont [6/16] 0.0, 128
  %921 = vxpose.xlu0.b32.cont [7/16] 0.0, 128
  %922 = vxpose.xlu0.b32.cont [8/16] 0.0, 128
  %923 = vxpose.xlu0.b32.cont [9/16] 0.0, 128
  %924 = vxpose.xlu0.b32.cont [10/16] 0.0, 128
  %925 = vxpose.xlu0.b32.cont [11/16] 0.0, 128
  %926 = vxpose.xlu0.b32.cont [12/16] 0.0, 128
  %927 = vxpose.xlu0.b32.cont [13/16] 0.0, 128
  %928 = vxpose.xlu0.b32.cont [14/16] 0.0, 128
  %929 = vxpose.xlu0.b32.cont [15/16] 0.0, 128
  %930 = vxpose.xlu0.b32.end [16/16] 0.0, 128
  %v931 = vpop.trf.xlu0
  %v932 = vpop.trf.xlu0
  %v933 = vpop.trf.xlu0
  %v934 = vpop.trf.xlu0
  %v935 = vpop.trf.xlu0
  %v936 = vpop.trf.xlu0
  %v937 = vpop.trf.xlu0
  %v938 = vpop.trf.xlu0
  %v939 = vpop.trf.xlu0
  %v940 = vpop.trf.xlu0
  %v941 = vpop.trf.xlu0
  %v942 = vpop.trf.xlu0
  %v943 = vpop.trf.xlu0
  %v944 = vpop.trf.xlu0
  %v945 = vpop.trf.xlu0
  %v946 = vpop.trf.xlu0
  %v948 = vsel %vm351, %v931, 0
  %v951 = vsel %vm351, %v932, 0
  %953 = vmatprep.subr.mxu0 0.0
  %954 = vmatpush1.msra.mxu0 %v806
  %955 = vmatprep.subr.mxu0 0.0
  %956 = vmatpush1.msra.mxu0 %v807
  %957 = vmatprep.subr.mxu0 0.0
  %958 = vmatpush1.msra.mxu0 %v808
  %959 = vmatprep.subr.mxu0 0.0
  %960 = vmatpush1.msra.mxu0 %v809
  %961 = vmatprep.subr.mxu0 0.0
  %962 = vmatpush1.msra.mxu0 0.0
  %963 = vmatprep.subr.mxu0 0.0
  %964 = vmatpush1.msra.mxu0 0.0
  %965 = vmatprep.subr.mxu0 0.0
  %966 = vmatpush1.msra.mxu0 0.0
  %967 = vmatprep.subr.mxu0 0.0
  %968 = vmatpush1.msra.mxu0 0.0
  %969 = vmatprep.subr.mxu0 0.0
  %970 = vmatpush1.msra.mxu0 0.0
  %971 = vmatprep.subr.mxu0 0.0
  %972 = vmatpush1.msra.mxu0 0.0
  %973 = vmatprep.subr.mxu0 0.0
  %974 = vmatpush1.msra.mxu0 0.0
  %975 = vmatprep.subr.mxu0 0.0
  %976 = vmatpush1.msra.mxu0 0.0
  %977 = vmatprep.subr.mxu0 0.0
  %978 = vmatpush1.msra.mxu0 0.0
  %979 = vmatprep.subr.mxu0 0.0
  %980 = vmatpush1.msra.mxu0 0.0
  %981 = vmatprep.subr.mxu0 0.0
  %982 = vmatpush1.msra.mxu0 0.0
  %983 = vmatprep.subr.mxu0 0.0
  %984 = vmatpush1.msra.mxu0 0.0
  %985 = vmatprep.subr.mxu0 0.0
  %986 = vmatpush1.msra.mxu0 0.0
  %987 = vmatprep.subr.mxu0 0.0
  %988 = vmatpush1.msra.mxu0 0.0
  %989 = vmatprep.subr.mxu0 0.0
  %990 = vmatpush1.msra.mxu0 0.0
  %991 = vmatprep.subr.mxu0 0.0
  %992 = vmatpush1.msra.mxu0 0.0
  %993 = vmatprep.subr.mxu0 0.0
  %994 = vmatpush1.msra.mxu0 0.0
  %995 = vmatprep.subr.mxu0 0.0
  %996 = vmatpush1.msra.mxu0 0.0
  %997 = vmatprep.subr.mxu0 0.0
  %998 = vmatpush1.msra.mxu0 0.0
  %999 = vmatprep.subr.mxu0 0.0
  %1000 = vmatpush1.msra.mxu0 0.0
  %1001 = vmatprep.subr.mxu0 0.0
  %1002 = vmatpush1.msra.mxu0 0.0
  %1003 = vmatprep.subr.mxu0 0.0
  %1004 = vmatpush1.msra.mxu0 0.0
  %1005 = vmatprep.subr.mxu0 0.0
  %1006 = vmatpush1.msra.mxu0 0.0
  %1007 = vmatprep.subr.mxu0 0.0
  %1008 = vmatpush1.msra.mxu0 0.0
  %1009 = vmatprep.subr.mxu0 0.0
  %1010 = vmatpush1.msra.mxu0 0.0
  %1011 = vmatprep.subr.mxu0 0.0
  %1012 = vmatpush1.msra.mxu0 0.0
  %1013 = vmatprep.subr.mxu0 0.0
  %1014 = vmatpush1.msra.mxu0 0.0
  %1015 = vmatprep.subr.mxu0 0.0
  %1016 = vmatpush1.msra.mxu0 0.0
  %1017 = vmatprep.mubr.f32.mxu0 0.0
  %1018 = vmatmul.mubr.f32.gmra.mrb[0].mxu0 %v948
  %v1019 = vpop.f32.mrb[0].mxu0
  %v1020 = vadd.f32 0.0, %v1019
  %v1021 = vpop.f32.mrb[0].mxu0
  %1022 = vmatprep.mubr.f32.mxu0 0.0
  %1023 = vmatmul.mubr.f32.gmra.mrb[0].mxu0 %v951
  %v1024 = vpop.f32.mrb[0].mxu0
  %v1025 = vadd.f32 0.0, %v1024
  %v1026 = vpop.f32.mrb[0].mxu0
  %1027 = vdwg.mxu0
  %v1028 = vadd.f32 %v538, %v1020
  %v1029 = vadd.f32 %v543, %v1025
  %1030 = vxpose.xlu0.b32.start [1/16] %v897, 128
  %1031 = vxpose.xlu0.b32.cont [2/16] %v902, 128
  %1032 = vxpose.xlu0.b32.cont [3/16] %v907, 128
  %1033 = vxpose.xlu0.b32.cont [4/16] %v912, 128
  %1034 = vxpose.xlu0.b32.cont [5/16] 0.0, 128
  %1035 = vxpose.xlu0.b32.cont [6/16] 0.0, 128
  %1036 = vxpose.xlu0.b32.cont [7/16] 0.0, 128
  %1037 = vxpose.xlu0.b32.cont [8/16] 0.0, 128
  %1038 = vxpose.xlu0.b32.cont [9/16] 0.0, 128
  %1039 = vxpose.xlu0.b32.cont [10/16] 0.0, 128
  %1040 = vxpose.xlu0.b32.cont [11/16] 0.0, 128
  %1041 = vxpose.xlu0.b32.cont [12/16] 0.0, 128
  %1042 = vxpose.xlu0.b32.cont [13/16] 0.0, 128
  %1043 = vxpose.xlu0.b32.cont [14/16] 0.0, 128
  %1044 = vxpose.xlu0.b32.cont [15/16] 0.0, 128
  %1045 = vxpose.xlu0.b32.end [16/16] 0.0, 128
  %v1046 = vpop.trf.xlu0
  %v1047 = vpop.trf.xlu0
  %v1048 = vpop.trf.xlu0
  %v1049 = vpop.trf.xlu0
  %v1050 = vpop.trf.xlu0
  %v1051 = vpop.trf.xlu0
  %v1052 = vpop.trf.xlu0
  %v1053 = vpop.trf.xlu0
  %v1054 = vpop.trf.xlu0
  %v1055 = vpop.trf.xlu0
  %v1056 = vpop.trf.xlu0
  %v1057 = vpop.trf.xlu0
  %v1058 = vpop.trf.xlu0
  %v1059 = vpop.trf.xlu0
  %v1060 = vpop.trf.xlu0
  %v1061 = vpop.trf.xlu0
  %v1063 = vsel %vm351, %v1046, 0
  %v1066 = vsel %vm351, %v1047, 0
  %1068 = vmatprep.subr.mxu0 0.0
  %1069 = vmatpush1.msra.mxu0 %v806
  %1070 = vmatprep.subr.mxu0 0.0
  %1071 = vmatpush1.msra.mxu0 %v807
  %1072 = vmatprep.subr.mxu0 0.0
  %1073 = vmatpush1.msra.mxu0 %v808
  %1074 = vmatprep.subr.mxu0 0.0
  %1075 = vmatpush1.msra.mxu0 %v809
  %1076 = vmatprep.subr.mxu0 0.0
  %1077 = vmatpush1.msra.mxu0 0.0
  %1078 = vmatprep.subr.mxu0 0.0
  %1079 = vmatpush1.msra.mxu0 0.0
  %1080 = vmatprep.subr.mxu0 0.0
  %1081 = vmatpush1.msra.mxu0 0.0
  %1082 = vmatprep.subr.mxu0 0.0
  %1083 = vmatpush1.msra.mxu0 0.0
  %1084 = vmatprep.subr.mxu0 0.0
  %1085 = vmatpush1.msra.mxu0 0.0
  %1086 = vmatprep.subr.mxu0 0.0
  %1087 = vmatpush1.msra.mxu0 0.0
  %1088 = vmatprep.subr.mxu0 0.0
  %1089 = vmatpush1.msra.mxu0 0.0
  %1090 = vmatprep.subr.mxu0 0.0
  %1091 = vmatpush1.msra.mxu0 0.0
  %1092 = vmatprep.subr.mxu0 0.0
  %1093 = vmatpush1.msra.mxu0 0.0
  %1094 = vmatprep.subr.mxu0 0.0
  %1095 = vmatpush1.msra.mxu0 0.0
  %1096 = vmatprep.subr.mxu0 0.0
  %1097 = vmatpush1.msra.mxu0 0.0
  %1098 = vmatprep.subr.mxu0 0.0
  %1099 = vmatpush1.msra.mxu0 0.0
  %1100 = vmatprep.subr.mxu0 0.0
  %1101 = vmatpush1.msra.mxu0 0.0
  %1102 = vmatprep.subr.mxu0 0.0
  %1103 = vmatpush1.msra.mxu0 0.0
  %1104 = vmatprep.subr.mxu0 0.0
  %1105 = vmatpush1.msra.mxu0 0.0
  %1106 = vmatprep.subr.mxu0 0.0
  %1107 = vmatpush1.msra.mxu0 0.0
  %1108 = vmatprep.subr.mxu0 0.0
  %1109 = vmatpush1.msra.mxu0 0.0
  %1110 = vmatprep.subr.mxu0 0.0
  %1111 = vmatpush1.msra.mxu0 0.0
  %1112 = vmatprep.subr.mxu0 0.0
  %1113 = vmatpush1.msra.mxu0 0.0
  %1114 = vmatprep.subr.mxu0 0.0
  %1115 = vmatpush1.msra.mxu0 0.0
  %1116 = vmatprep.subr.mxu0 0.0
  %1117 = vmatpush1.msra.mxu0 0.0
  %1118 = vmatprep.subr.mxu0 0.0
  %1119 = vmatpush1.msra.mxu0 0.0
  %1120 = vmatprep.subr.mxu0 0.0
  %1121 = vmatpush1.msra.mxu0 0.0
  %1122 = vmatprep.subr.mxu0 0.0
  %1123 = vmatpush1.msra.mxu0 0.0
  %1124 = vmatprep.subr.mxu0 0.0
  %1125 = vmatpush1.msra.mxu0 0.0
  %1126 = vmatprep.subr.mxu0 0.0
  %1127 = vmatpush1.msra.mxu0 0.0
  %1128 = vmatprep.subr.mxu0 0.0
  %1129 = vmatpush1.msra.mxu0 0.0
  %1130 = vmatprep.subr.mxu0 0.0
  %1131 = vmatpush1.msra.mxu0 0.0
  %1132 = vmatprep.mubr.f32.mxu0 0.0
  %1133 = vmatmul.mubr.f32.gmra.mrb[0].mxu0 %v1063
  %v1134 = vpop.f32.mrb[0].mxu0
  %v1135 = vadd.f32 0.0, %v1134
  %v1136 = vpop.f32.mrb[0].mxu0
  %1137 = vmatprep.mubr.f32.mxu0 0.0
  %1138 = vmatmul.mubr.f32.gmra.mrb[0].mxu0 %v1066
  %v1139 = vpop.f32.mrb[0].mxu0
  %v1140 = vadd.f32 0.0, %v1139
  %v1141 = vpop.f32.mrb[0].mxu0
  %1142 = vdwg.mxu0
  %v1143 = vadd.f32 %v764, %v1135
  %v1144 = vadd.f32 %v769, %v1140
  %s1145 = scalar_lea.vmem %s1, 768
  %v1146 = vld [vmem:[%s1145] sm:$0xff]
  %v1147 = vld [vmem:[%s1145 + $0x8] sm:$0xff]
  %v1148 = vld [vmem:[%s1145 + $0x10] sm:$0xff]
  %v1149 = vld [vmem:[%s1145 + $0x18] sm:$0xff]
  %v1150 = vld [vmem:[%s1145 + $0x20] sm:$0xff]
  %v1151 = vld [vmem:[%s1145 + $0x28] sm:$0xff]
  %v1152 = vld [vmem:[%s1145 + $0x30] sm:$0xff]
  %v1153 = vld [vmem:[%s1145 + $0x38] sm:$0xff]
  %v1154 = vld [vmem:[%s1145 + $0x40] sm:$0xff]
  %v1155 = vld [vmem:[%s1145 + $0x48] sm:$0xff]
  %v1156 = vld [vmem:[%s1145 + $0x50] sm:$0xff]
  %v1157 = vld [vmem:[%s1145 + $0x58] sm:$0xff]
  %v1158 = vld [vmem:[%s1145 + $0x60] sm:$0xff]
  %v1159 = vld [vmem:[%s1145 + $0x68] sm:$0xff]
  %v1160 = vld [vmem:[%s1145 + $0x70] sm:$0xff]
  %v1161 = vld [vmem:[%s1145 + $0x78] sm:$0xff]
  %v1162 = vld [vmem:[%s1145 + $0x80] sm:$0xff]
  %v1163 = vld [vmem:[%s1145 + $0x88] sm:$0xff]
  %v1164 = vld [vmem:[%s1145 + $0x90] sm:$0xff]
  %v1165 = vld [vmem:[%s1145 + $0x98] sm:$0xff]
  %v1166 = vld [vmem:[%s1145 + $0xa0] sm:$0xff]
  %v1167 = vld [vmem:[%s1145 + $0xa8] sm:$0xff]
  %v1168 = vld [vmem:[%s1145 + $0xb0] sm:$0xff]
  %v1169 = vld [vmem:[%s1145 + $0xb8] sm:$0xff]
  %v1170 = vld [vmem:[%s1145 + $0xc0] sm:$0xff]
  %v1171 = vld [vmem:[%s1145 + $0xc8] sm:$0xff]
  %v1172 = vld [vmem:[%s1145 + $0xd0] sm:$0xff]
  %v1173 = vld [vmem:[%s1145 + $0xd8] sm:$0xff]
  %v1174 = vld [vmem:[%s1145 + $0xe0] sm:$0xff]
  %v1175 = vld [vmem:[%s1145 + $0xe8] sm:$0xff]
  %v1176 = vld [vmem:[%s1145 + $0xf0] sm:$0xff]
  %v1177 = vld [vmem:[%s1145 + $0xf8] sm:$0xff]
  %s1178 = scalar_lea.vmem %s2, 96
  %v1179 = vld [vmem:[%s1178] sm:$0xff]
  %v1180 = vld [vmem:[%s1178 + $0x8] sm:$0xff]
  %v1181 = vld [vmem:[%s1178 + $0x10] sm:$0xff]
  %v1182 = vld [vmem:[%s1178 + $0x18] sm:$0xff]
  %1183 = vmatprep.subr.mxu0 0.0
  %1184 = vmatpush1.msra.mxu0 %v1146
  %1185 = vmatprep.subr.mxu0 0.0
  %1186 = vmatpush1.msra.mxu0 %v1147
  %1187 = vmatprep.subr.mxu0 0.0
  %1188 = vmatpush1.msra.mxu0 %v1148
  %1189 = vmatprep.subr.mxu0 0.0
  %1190 = vmatpush1.msra.mxu0 %v1149
  %1191 = vmatprep.subr.mxu0 0.0
  %1192 = vmatpush1.msra.mxu0 %v1150
  %1193 = vmatprep.subr.mxu0 0.0
  %1194 = vmatpush1.msra.mxu0 %v1151
  %1195 = vmatprep.subr.mxu0 0.0
  %1196 = vmatpush1.msra.mxu0 %v1152
  %1197 = vmatprep.subr.mxu0 0.0
  %1198 = vmatpush1.msra.mxu0 %v1153
  %1199 = vmatprep.subr.mxu0 0.0
  %1200 = vmatpush1.msra.mxu0 %v1154
  %1201 = vmatprep.subr.mxu0 0.0
  %1202 = vmatpush1.msra.mxu0 %v1155
  %1203 = vmatprep.subr.mxu0 0.0
  %1204 = vmatpush1.msra.mxu0 %v1156
  %1205 = vmatprep.subr.mxu0 0.0
  %1206 = vmatpush1.msra.mxu0 %v1157
  %1207 = vmatprep.subr.mxu0 0.0
  %1208 = vmatpush1.msra.mxu0 %v1158
  %1209 = vmatprep.subr.mxu0 0.0
  %1210 = vmatpush1.msra.mxu0 %v1159
  %1211 = vmatprep.subr.mxu0 0.0
  %1212 = vmatpush1.msra.mxu0 %v1160
  %1213 = vmatprep.subr.mxu0 0.0
  %1214 = vmatpush1.msra.mxu0 %v1161
  %1215 = vmatprep.subr.mxu0 0.0
  %1216 = vmatpush1.msra.mxu0 %v1162
  %1217 = vmatprep.subr.mxu0 0.0
  %1218 = vmatpush1.msra.mxu0 %v1163
  %1219 = vmatprep.subr.mxu0 0.0
  %1220 = vmatpush1.msra.mxu0 %v1164
  %1221 = vmatprep.subr.mxu0 0.0
  %1222 = vmatpush1.msra.mxu0 %v1165
  %1223 = vmatprep.subr.mxu0 0.0
  %1224 = vmatpush1.msra.mxu0 %v1166
  %1225 = vmatprep.subr.mxu0 0.0
  %1226 = vmatpush1.msra.mxu0 %v1167
  %1227 = vmatprep.subr.mxu0 0.0
  %1228 = vmatpush1.msra.mxu0 %v1168
  %1229 = vmatprep.subr.mxu0 0.0
  %1230 = vmatpush1.msra.mxu0 %v1169
  %1231 = vmatprep.subr.mxu0 0.0
  %1232 = vmatpush1.msra.mxu0 %v1170
  %1233 = vmatprep.subr.mxu0 0.0
  %1234 = vmatpush1.msra.mxu0 %v1171
  %1235 = vmatprep.subr.mxu0 0.0
  %1236 = vmatpush1.msra.mxu0 %v1172
  %1237 = vmatprep.subr.mxu0 0.0
  %1238 = vmatpush1.msra.mxu0 %v1173
  %1239 = vmatprep.subr.mxu0 0.0
  %1240 = vmatpush1.msra.mxu0 %v1174
  %1241 = vmatprep.subr.mxu0 0.0
  %1242 = vmatpush1.msra.mxu0 %v1175
  %1243 = vmatprep.subr.mxu0 0.0
  %1244 = vmatpush1.msra.mxu0 %v1176
  %1245 = vmatprep.subr.mxu0 0.0
  %1246 = vmatpush1.msra.mxu0 %v1177
  %1247 = vmatprep.mubr.f32.mxu0 %v19
  %1248 = vmatmul.mubr.f32.gmra.mrb[0].mxu0 %v18
  %v1249 = vpop.f32.mrb[0].mxu0
  %v1250 = vadd.f32 0.0, %v1249
  %v1251 = vpop.f32.mrb[0].mxu0
  %1252 = vmatprep.mubr.f32.mxu0 %v21
  %1253 = vmatmul.mubr.f32.gmra.mrb[0].mxu0 %v20
  %v1254 = vpop.f32.mrb[0].mxu0
  %v1255 = vadd.f32 0.0, %v1254
  %v1256 = vpop.f32.mrb[0].mxu0
  %1257 = vmatprep.mubr.f32.mxu0 %v23
  %1258 = vmatmul.mubr.f32.gmra.mrb[0].mxu0 %v22
  %v1259 = vpop.f32.mrb[0].mxu0
  %v1260 = vadd.f32 0.0, %v1259
  %v1261 = vpop.f32.mrb[0].mxu0
  %1262 = vmatprep.mubr.f32.mxu0 %v25
  %1263 = vmatmul.mubr.f32.gmra.mrb[0].mxu0 %v24
  %v1264 = vpop.f32.mrb[0].mxu0
  %v1265 = vadd.f32 0.0, %v1264
  %v1266 = vpop.f32.mrb[0].mxu0
  %1267 = vmatprep.mubr.f32.mxu0 %v27
  %1268 = vmatmul.mubr.f32.gmra.mrb[0].mxu0 %v26
  %v1269 = vpop.f32.mrb[0].mxu0
  %v1270 = vadd.f32 0.0, %v1269
  %v1271 = vpop.f32.mrb[0].mxu0
  %1272 = vmatprep.mubr.f32.mxu0 %v29
  %1273 = vmatmul.mubr.f32.gmra.mrb[0].mxu0 %v28
  %v1274 = vpop.f32.mrb[0].mxu0
  %v1275 = vadd.f32 0.0, %v1274
  %v1276 = vpop.f32.mrb[0].mxu0
  %1277 = vmatprep.mubr.f32.mxu0 %v31
  %1278 = vmatmul.mubr.f32.gmra.mrb[0].mxu0 %v30
  %v1279 = vpop.f32.mrb[0].mxu0
  %v1280 = vadd.f32 0.0, %v1279
  %v1281 = vpop.f32.mrb[0].mxu0
  %1282 = vmatprep.mubr.f32.mxu0 %v33
  %1283 = vmatmul.mubr.f32.gmra.mrb[0].mxu0 %v32
  %v1284 = vpop.f32.mrb[0].mxu0
  %v1285 = vadd.f32 0.0, %v1284
  %v1286 = vpop.f32.mrb[0].mxu0
  %1287 = vdwg.mxu0
  %1288 = vxpose.xlu0.b32.start [1/16] %v1250, 128
  %1289 = vxpose.xlu0.b32.cont [2/16] %v1255, 128
  %1290 = vxpose.xlu0.b32.cont [3/16] %v1260, 128
  %1291 = vxpose.xlu0.b32.cont [4/16] %v1265, 128
  %1292 = vxpose.xlu0.b32.cont [5/16] 0.0, 128
  %1293 = vxpose.xlu0.b32.cont [6/16] 0.0, 128
  %1294 = vxpose.xlu0.b32.cont [7/16] 0.0, 128
  %1295 = vxpose.xlu0.b32.cont [8/16] 0.0, 128
  %1296 = vxpose.xlu0.b32.cont [9/16] 0.0, 128
  %1297 = vxpose.xlu0.b32.cont [10/16] 0.0, 128
  %1298 = vxpose.xlu0.b32.cont [11/16] 0.0, 128
  %1299 = vxpose.xlu0.b32.cont [12/16] 0.0, 128
  %1300 = vxpose.xlu0.b32.cont [13/16] 0.0, 128
  %1301 = vxpose.xlu0.b32.cont [14/16] 0.0, 128
  %1302 = vxpose.xlu0.b32.cont [15/16] 0.0, 128
  %1303 = vxpose.xlu0.b32.end [16/16] 0.0, 128
  %v1304 = vpop.trf.xlu0
  %v1305 = vpop.trf.xlu0
  %v1306 = vpop.trf.xlu0
  %v1307 = vpop.trf.xlu0
  %v1308 = vpop.trf.xlu0
  %v1309 = vpop.trf.xlu0
  %v1310 = vpop.trf.xlu0
  %v1311 = vpop.trf.xlu0
  %v1312 = vpop.trf.xlu0
  %v1313 = vpop.trf.xlu0
  %v1314 = vpop.trf.xlu0
  %v1315 = vpop.trf.xlu0
  %v1316 = vpop.trf.xlu0
  %v1317 = vpop.trf.xlu0
  %v1318 = vpop.trf.xlu0
  %v1319 = vpop.trf.xlu0
  %v1321 = vsel %vm351, %v1304, 0
  %v1324 = vsel %vm351, %v1305, 0
  %1326 = vmatprep.subr.mxu0 0.0
  %1327 = vmatpush1.msra.mxu0 %v1179
  %1328 = vmatprep.subr.mxu0 0.0
  %1329 = vmatpush1.msra.mxu0 %v1180
  %1330 = vmatprep.subr.mxu0 0.0
  %1331 = vmatpush1.msra.mxu0 %v1181
  %1332 = vmatprep.subr.mxu0 0.0
  %1333 = vmatpush1.msra.mxu0 %v1182
  %1334 = vmatprep.subr.mxu0 0.0
  %1335 = vmatpush1.msra.mxu0 0.0
  %1336 = vmatprep.subr.mxu0 0.0
  %1337 = vmatpush1.msra.mxu0 0.0
  %1338 = vmatprep.subr.mxu0 0.0
  %1339 = vmatpush1.msra.mxu0 0.0
  %1340 = vmatprep.subr.mxu0 0.0
  %1341 = vmatpush1.msra.mxu0 0.0
  %1342 = vmatprep.subr.mxu0 0.0
  %1343 = vmatpush1.msra.mxu0 0.0
  %1344 = vmatprep.subr.mxu0 0.0
  %1345 = vmatpush1.msra.mxu0 0.0
  %1346 = vmatprep.subr.mxu0 0.0
  %1347 = vmatpush1.msra.mxu0 0.0
  %1348 = vmatprep.subr.mxu0 0.0
  %1349 = vmatpush1.msra.mxu0 0.0
  %1350 = vmatprep.subr.mxu0 0.0
  %1351 = vmatpush1.msra.mxu0 0.0
  %1352 = vmatprep.subr.mxu0 0.0
  %1353 = vmatpush1.msra.mxu0 0.0
  %1354 = vmatprep.subr.mxu0 0.0
  %1355 = vmatpush1.msra.mxu0 0.0
  %1356 = vmatprep.subr.mxu0 0.0
  %1357 = vmatpush1.msra.mxu0 0.0
  %1358 = vmatprep.subr.mxu0 0.0
  %1359 = vmatpush1.msra.mxu0 0.0
  %1360 = vmatprep.subr.mxu0 0.0
  %1361 = vmatpush1.msra.mxu0 0.0
  %1362 = vmatprep.subr.mxu0 0.0
  %1363 = vmatpush1.msra.mxu0 0.0
  %1364 = vmatprep.subr.mxu0 0.0
  %1365 = vmatpush1.msra.mxu0 0.0
  %1366 = vmatprep.subr.mxu0 0.0
  %1367 = vmatpush1.msra.mxu0 0.0
  %1368 = vmatprep.subr.mxu0 0.0
  %1369 = vmatpush1.msra.mxu0 0.0
  %1370 = vmatprep.subr.mxu0 0.0
  %1371 = vmatpush1.msra.mxu0 0.0
  %1372 = vmatprep.subr.mxu0 0.0
  %1373 = vmatpush1.msra.mxu0 0.0
  %1374 = vmatprep.subr.mxu0 0.0
  %1375 = vmatpush1.msra.mxu0 0.0
  %1376 = vmatprep.subr.mxu0 0.0
  %1377 = vmatpush1.msra.mxu0 0.0
  %1378 = vmatprep.subr.mxu0 0.0
  %1379 = vmatpush1.msra.mxu0 0.0
  %1380 = vmatprep.subr.mxu0 0.0
  %1381 = vmatpush1.msra.mxu0 0.0
  %1382 = vmatprep.subr.mxu0 0.0
  %1383 = vmatpush1.msra.mxu0 0.0
  %1384 = vmatprep.subr.mxu0 0.0
  %1385 = vmatpush1.msra.mxu0 0.0
  %1386 = vmatprep.subr.mxu0 0.0
  %1387 = vmatpush1.msra.mxu0 0.0
  %1388 = vmatprep.subr.mxu0 0.0
  %1389 = vmatpush1.msra.mxu0 0.0
  %1390 = vmatprep.mubr.f32.mxu0 0.0
  %1391 = vmatmul.mubr.f32.gmra.mrb[0].mxu0 %v1321
  %v1392 = vpop.f32.mrb[0].mxu0
  %v1393 = vadd.f32 0.0, %v1392
  %v1394 = vpop.f32.mrb[0].mxu0
  %1395 = vmatprep.mubr.f32.mxu0 0.0
  %1396 = vmatmul.mubr.f32.gmra.mrb[0].mxu0 %v1324
  %v1397 = vpop.f32.mrb[0].mxu0
  %v1398 = vadd.f32 0.0, %v1397
  %v1399 = vpop.f32.mrb[0].mxu0
  %1400 = vdwg.mxu0
  %v1401 = vadd.f32 %v1028, %v1393
  %v1402 = vadd.f32 %v1029, %v1398
  %1403 = vxpose.xlu0.b32.start [1/16] %v1270, 128
  %1404 = vxpose.xlu0.b32.cont [2/16] %v1275, 128
  %1405 = vxpose.xlu0.b32.cont [3/16] %v1280, 128
  %1406 = vxpose.xlu0.b32.cont [4/16] %v1285, 128
  %1407 = vxpose.xlu0.b32.cont [5/16] 0.0, 128
  %1408 = vxpose.xlu0.b32.cont [6/16] 0.0, 128
  %1409 = vxpose.xlu0.b32.cont [7/16] 0.0, 128
  %1410 = vxpose.xlu0.b32.cont [8/16] 0.0, 128
  %1411 = vxpose.xlu0.b32.cont [9/16] 0.0, 128
  %1412 = vxpose.xlu0.b32.cont [10/16] 0.0, 128
  %1413 = vxpose.xlu0.b32.cont [11/16] 0.0, 128
  %1414 = vxpose.xlu0.b32.cont [12/16] 0.0, 128
  %1415 = vxpose.xlu0.b32.cont [13/16] 0.0, 128
  %1416 = vxpose.xlu0.b32.cont [14/16] 0.0, 128
  %1417 = vxpose.xlu0.b32.cont [15/16] 0.0, 128
  %1418 = vxpose.xlu0.b32.end [16/16] 0.0, 128
  %v1419 = vpop.trf.xlu0
  %v1420 = vpop.trf.xlu0
  %v1421 = vpop.trf.xlu0
  %v1422 = vpop.trf.xlu0
  %v1423 = vpop.trf.xlu0
  %v1424 = vpop.trf.xlu0
  %v1425 = vpop.trf.xlu0
  %v1426 = vpop.trf.xlu0
  %v1427 = vpop.trf.xlu0
  %v1428 = vpop.trf.xlu0
  %v1429 = vpop.trf.xlu0
  %v1430 = vpop.trf.xlu0
  %v1431 = vpop.trf.xlu0
  %v1432 = vpop.trf.xlu0
  %v1433 = vpop.trf.xlu0
  %v1434 = vpop.trf.xlu0
  %v1436 = vsel %vm351, %v1419, 0
  %v1439 = vsel %vm351, %v1420, 0
  %1441 = vmatprep.subr.mxu0 0.0
  %1442 = vmatpush1.msra.mxu0 %v1179
  %1443 = vmatprep.subr.mxu0 0.0
  %1444 = vmatpush1.msra.mxu0 %v1180
  %1445 = vmatprep.subr.mxu0 0.0
  %1446 = vmatpush1.msra.mxu0 %v1181
  %1447 = vmatprep.subr.mxu0 0.0
  %1448 = vmatpush1.msra.mxu0 %v1182
  %1449 = vmatprep.subr.mxu0 0.0
  %1450 = vmatpush1.msra.mxu0 0.0
  %1451 = vmatprep.subr.mxu0 0.0
  %1452 = vmatpush1.msra.mxu0 0.0
  %1453 = vmatprep.subr.mxu0 0.0
  %1454 = vmatpush1.msra.mxu0 0.0
  %1455 = vmatprep.subr.mxu0 0.0
  %1456 = vmatpush1.msra.mxu0 0.0
  %1457 = vmatprep.subr.mxu0 0.0
  %1458 = vmatpush1.msra.mxu0 0.0
  %1459 = vmatprep.subr.mxu0 0.0
  %1460 = vmatpush1.msra.mxu0 0.0
  %1461 = vmatprep.subr.mxu0 0.0
  %1462 = vmatpush1.msra.mxu0 0.0
  %1463 = vmatprep.subr.mxu0 0.0
  %1464 = vmatpush1.msra.mxu0 0.0
  %1465 = vmatprep.subr.mxu0 0.0
  %1466 = vmatpush1.msra.mxu0 0.0
  %1467 = vmatprep.subr.mxu0 0.0
  %1468 = vmatpush1.msra.mxu0 0.0
  %1469 = vmatprep.subr.mxu0 0.0
  %1470 = vmatpush1.msra.mxu0 0.0
  %1471 = vmatprep.subr.mxu0 0.0
  %1472 = vmatpush1.msra.mxu0 0.0
  %1473 = vmatprep.subr.mxu0 0.0
  %1474 = vmatpush1.msra.mxu0 0.0
  %1475 = vmatprep.subr.mxu0 0.0
  %1476 = vmatpush1.msra.mxu0 0.0
  %1477 = vmatprep.subr.mxu0 0.0
  %1478 = vmatpush1.msra.mxu0 0.0
  %1479 = vmatprep.subr.mxu0 0.0
  %1480 = vmatpush1.msra.mxu0 0.0
  %1481 = vmatprep.subr.mxu0 0.0
  %1482 = vmatpush1.msra.mxu0 0.0
  %1483 = vmatprep.subr.mxu0 0.0
  %1484 = vmatpush1.msra.mxu0 0.0
  %1485 = vmatprep.subr.mxu0 0.0
  %1486 = vmatpush1.msra.mxu0 0.0
  %1487 = vmatprep.subr.mxu0 0.0
  %1488 = vmatpush1.msra.mxu0 0.0
  %1489 = vmatprep.subr.mxu0 0.0
  %1490 = vmatpush1.msra.mxu0 0.0
  %1491 = vmatprep.subr.mxu0 0.0
  %1492 = vmatpush1.msra.mxu0 0.0
  %1493 = vmatprep.subr.mxu0 0.0
  %1494 = vmatpush1.msra.mxu0 0.0
  %1495 = vmatprep.subr.mxu0 0.0
  %1496 = vmatpush1.msra.mxu0 0.0
  %1497 = vmatprep.subr.mxu0 0.0
  %1498 = vmatpush1.msra.mxu0 0.0
  %1499 = vmatprep.subr.mxu0 0.0
  %1500 = vmatpush1.msra.mxu0 0.0
  %1501 = vmatprep.subr.mxu0 0.0
  %1502 = vmatpush1.msra.mxu0 0.0
  %1503 = vmatprep.subr.mxu0 0.0
  %1504 = vmatpush1.msra.mxu0 0.0
  %1505 = vmatprep.mubr.f32.mxu0 0.0
  %1506 = vmatmul.mubr.f32.gmra.mrb[0].mxu0 %v1436
  %v1507 = vpop.f32.mrb[0].mxu0
  %v1508 = vadd.f32 0.0, %v1507
  %v1509 = vpop.f32.mrb[0].mxu0
  %1510 = vmatprep.mubr.f32.mxu0 0.0
  %1511 = vmatmul.mubr.f32.gmra.mrb[0].mxu0 %v1439
  %v1512 = vpop.f32.mrb[0].mxu0
  %v1513 = vadd.f32 0.0, %v1512
  %v1514 = vpop.f32.mrb[0].mxu0
  %1515 = vdwg.mxu0
  %v1516 = vadd.f32 %v1143, %v1508
  %v1517 = vadd.f32 %v1144, %v1513
  %s1518 = scalar_lea.vmem %s1, 1024
  %v1519 = vld [vmem:[%s1518] sm:$0xff]
  %v1520 = vld [vmem:[%s1518 + $0x8] sm:$0xff]
  %v1521 = vld [vmem:[%s1518 + $0x10] sm:$0xff]
  %v1522 = vld [vmem:[%s1518 + $0x18] sm:$0xff]
  %v1523 = vld [vmem:[%s1518 + $0x20] sm:$0xff]
  %v1524 = vld [vmem:[%s1518 + $0x28] sm:$0xff]
  %v1525 = vld [vmem:[%s1518 + $0x30] sm:$0xff]
  %v1526 = vld [vmem:[%s1518 + $0x38] sm:$0xff]
  %v1527 = vld [vmem:[%s1518 + $0x40] sm:$0xff]
  %v1528 = vld [vmem:[%s1518 + $0x48] sm:$0xff]
  %v1529 = vld [vmem:[%s1518 + $0x50] sm:$0xff]
  %v1530 = vld [vmem:[%s1518 + $0x58] sm:$0xff]
  %v1531 = vld [vmem:[%s1518 + $0x60] sm:$0xff]
  %v1532 = vld [vmem:[%s1518 + $0x68] sm:$0xff]
  %v1533 = vld [vmem:[%s1518 + $0x70] sm:$0xff]
  %v1534 = vld [vmem:[%s1518 + $0x78] sm:$0xff]
  %v1535 = vld [vmem:[%s1518 + $0x80] sm:$0xff]
  %v1536 = vld [vmem:[%s1518 + $0x88] sm:$0xff]
  %v1537 = vld [vmem:[%s1518 + $0x90] sm:$0xff]
  %v1538 = vld [vmem:[%s1518 + $0x98] sm:$0xff]
  %v1539 = vld [vmem:[%s1518 + $0xa0] sm:$0xff]
  %v1540 = vld [vmem:[%s1518 + $0xa8] sm:$0xff]
  %v1541 = vld [vmem:[%s1518 + $0xb0] sm:$0xff]
  %v1542 = vld [vmem:[%s1518 + $0xb8] sm:$0xff]
  %v1543 = vld [vmem:[%s1518 + $0xc0] sm:$0xff]
  %v1544 = vld [vmem:[%s1518 + $0xc8] sm:$0xff]
  %v1545 = vld [vmem:[%s1518 + $0xd0] sm:$0xff]
  %v1546 = vld [vmem:[%s1518 + $0xd8] sm:$0xff]
  %v1547 = vld [vmem:[%s1518 + $0xe0] sm:$0xff]
  %v1548 = vld [vmem:[%s1518 + $0xe8] sm:$0xff]
  %v1549 = vld [vmem:[%s1518 + $0xf0] sm:$0xff]
  %v1550 = vld [vmem:[%s1518 + $0xf8] sm:$0xff]
  %s1551 = scalar_lea.vmem %s2, 128
  %v1552 = vld [vmem:[%s1551] sm:$0xff]
  %v1553 = vld [vmem:[%s1551 + $0x8] sm:$0xff]
  %v1554 = vld [vmem:[%s1551 + $0x10] sm:$0xff]
  %v1555 = vld [vmem:[%s1551 + $0x18] sm:$0xff]
  %1556 = vmatprep.subr.mxu0 0.0
  %1557 = vmatpush1.msra.mxu0 %v1519
  %1558 = vmatprep.subr.mxu0 0.0
  %1559 = vmatpush1.msra.mxu0 %v1520
  %1560 = vmatprep.subr.mxu0 0.0
  %1561 = vmatpush1.msra.mxu0 %v1521
  %1562 = vmatprep.subr.mxu0 0.0
  %1563 = vmatpush1.msra.mxu0 %v1522
  %1564 = vmatprep.subr.mxu0 0.0
  %1565 = vmatpush1.msra.mxu0 %v1523
  %1566 = vmatprep.subr.mxu0 0.0
  %1567 = vmatpush1.msra.mxu0 %v1524
  %1568 = vmatprep.subr.mxu0 0.0
  %1569 = vmatpush1.msra.mxu0 %v1525
  %1570 = vmatprep.subr.mxu0 0.0
  %1571 = vmatpush1.msra.mxu0 %v1526
  %1572 = vmatprep.subr.mxu0 0.0
  %1573 = vmatpush1.msra.mxu0 %v1527
  %1574 = vmatprep.subr.mxu0 0.0
  %1575 = vmatpush1.msra.mxu0 %v1528
  %1576 = vmatprep.subr.mxu0 0.0
  %1577 = vmatpush1.msra.mxu0 %v1529
  %1578 = vmatprep.subr.mxu0 0.0
  %1579 = vmatpush1.msra.mxu0 %v1530
  %1580 = vmatprep.subr.mxu0 0.0
  %1581 = vmatpush1.msra.mxu0 %v1531
  %1582 = vmatprep.subr.mxu0 0.0
  %1583 = vmatpush1.msra.mxu0 %v1532
  %1584 = vmatprep.subr.mxu0 0.0
  %1585 = vmatpush1.msra.mxu0 %v1533
  %1586 = vmatprep.subr.mxu0 0.0
  %1587 = vmatpush1.msra.mxu0 %v1534
  %1588 = vmatprep.subr.mxu0 0.0
  %1589 = vmatpush1.msra.mxu0 %v1535
  %1590 = vmatprep.subr.mxu0 0.0
  %1591 = vmatpush1.msra.mxu0 %v1536
  %1592 = vmatprep.subr.mxu0 0.0
  %1593 = vmatpush1.msra.mxu0 %v1537
  %1594 = vmatprep.subr.mxu0 0.0
  %1595 = vmatpush1.msra.mxu0 %v1538
  %1596 = vmatprep.subr.mxu0 0.0
  %1597 = vmatpush1.msra.mxu0 %v1539
  %1598 = vmatprep.subr.mxu0 0.0
  %1599 = vmatpush1.msra.mxu0 %v1540
  %1600 = vmatprep.subr.mxu0 0.0
  %1601 = vmatpush1.msra.mxu0 %v1541
  %1602 = vmatprep.subr.mxu0 0.0
  %1603 = vmatpush1.msra.mxu0 %v1542
  %1604 = vmatprep.subr.mxu0 0.0
  %1605 = vmatpush1.msra.mxu0 %v1543
  %1606 = vmatprep.subr.mxu0 0.0
  %1607 = vmatpush1.msra.mxu0 %v1544
  %1608 = vmatprep.subr.mxu0 0.0
  %1609 = vmatpush1.msra.mxu0 %v1545
  %1610 = vmatprep.subr.mxu0 0.0
  %1611 = vmatpush1.msra.mxu0 %v1546
  %1612 = vmatprep.subr.mxu0 0.0
  %1613 = vmatpush1.msra.mxu0 %v1547
  %1614 = vmatprep.subr.mxu0 0.0
  %1615 = vmatpush1.msra.mxu0 %v1548
  %1616 = vmatprep.subr.mxu0 0.0
  %1617 = vmatpush1.msra.mxu0 %v1549
  %1618 = vmatprep.subr.mxu0 0.0
  %1619 = vmatpush1.msra.mxu0 %v1550
  %1620 = vmatprep.mubr.f32.mxu0 %v19
  %1621 = vmatmul.mubr.f32.gmra.mrb[0].mxu0 %v18
  %v1622 = vpop.f32.mrb[0].mxu0
  %v1623 = vadd.f32 0.0, %v1622
  %v1624 = vpop.f32.mrb[0].mxu0
  %1625 = vmatprep.mubr.f32.mxu0 %v21
  %1626 = vmatmul.mubr.f32.gmra.mrb[0].mxu0 %v20
  %v1627 = vpop.f32.mrb[0].mxu0
  %v1628 = vadd.f32 0.0, %v1627
  %v1629 = vpop.f32.mrb[0].mxu0
  %1630 = vmatprep.mubr.f32.mxu0 %v23
  %1631 = vmatmul.mubr.f32.gmra.mrb[0].mxu0 %v22
  %v1632 = vpop.f32.mrb[0].mxu0
  %v1633 = vadd.f32 0.0, %v1632
  %v1634 = vpop.f32.mrb[0].mxu0
  %1635 = vmatprep.mubr.f32.mxu0 %v25
  %1636 = vmatmul.mubr.f32.gmra.mrb[0].mxu0 %v24
  %v1637 = vpop.f32.mrb[0].mxu0
  %v1638 = vadd.f32 0.0, %v1637
  %v1639 = vpop.f32.mrb[0].mxu0
  %1640 = vmatprep.mubr.f32.mxu0 %v27
  %1641 = vmatmul.mubr.f32.gmra.mrb[0].mxu0 %v26
  %v1642 = vpop.f32.mrb[0].mxu0
  %v1643 = vadd.f32 0.0, %v1642
  %v1644 = vpop.f32.mrb[0].mxu0
  %1645 = vmatprep.mubr.f32.mxu0 %v29
  %1646 = vmatmul.mubr.f32.gmra.mrb[0].mxu0 %v28
  %v1647 = vpop.f32.mrb[0].mxu0
  %v1648 = vadd.f32 0.0, %v1647
  %v1649 = vpop.f32.mrb[0].mxu0
  %1650 = vmatprep.mubr.f32.mxu0 %v31
  %1651 = vmatmul.mubr.f32.gmra.mrb[0].mxu0 %v30
  %v1652 = vpop.f32.mrb[0].mxu0
  %v1653 = vadd.f32 0.0, %v1652
  %v1654 = vpop.f32.mrb[0].mxu0
  %1655 = vmatprep.mubr.f32.mxu0 %v33
  %1656 = vmatmul.mubr.f32.gmra.mrb[0].mxu0 %v32
  %v1657 = vpop.f32.mrb[0].mxu0
  %v1658 = vadd.f32 0.0, %v1657
  %v1659 = vpop.f32.mrb[0].mxu0
  %1660 = vdwg.mxu0
  %1661 = vxpose.xlu0.b32.start [1/16] %v1623, 128
  %1662 = vxpose.xlu0.b32.cont [2/16] %v1628, 128
  %1663 = vxpose.xlu0.b32.cont [3/16] %v1633, 128
  %1664 = vxpose.xlu0.b32.cont [4/16] %v1638, 128
  %1665 = vxpose.xlu0.b32.cont [5/16] 0.0, 128
  %1666 = vxpose.xlu0.b32.cont [6/16] 0.0, 128
  %1667 = vxpose.xlu0.b32.cont [7/16] 0.0, 128
  %1668 = vxpose.xlu0.b32.cont [8/16] 0.0, 128
  %1669 = vxpose.xlu0.b32.cont [9/16] 0.0, 128
  %1670 = vxpose.xlu0.b32.cont [10/16] 0.0, 128
  %1671 = vxpose.xlu0.b32.cont [11/16] 0.0, 128
  %1672 = vxpose.xlu0.b32.cont [12/16] 0.0, 128
  %1673 = vxpose.xlu0.b32.cont [13/16] 0.0, 128
  %1674 = vxpose.xlu0.b32.cont [14/16] 0.0, 128
  %1675 = vxpose.xlu0.b32.cont [15/16] 0.0, 128
  %1676 = vxpose.xlu0.b32.end [16/16] 0.0, 128
  %v1677 = vpop.trf.xlu0
  %v1678 = vpop.trf.xlu0
  %v1679 = vpop.trf.xlu0
  %v1680 = vpop.trf.xlu0
  %v1681 = vpop.trf.xlu0
  %v1682 = vpop.trf.xlu0
  %v1683 = vpop.trf.xlu0
  %v1684 = vpop.trf.xlu0
  %v1685 = vpop.trf.xlu0
  %v1686 = vpop.trf.xlu0
  %v1687 = vpop.trf.xlu0
  %v1688 = vpop.trf.xlu0
  %v1689 = vpop.trf.xlu0
  %v1690 = vpop.trf.xlu0
  %v1691 = vpop.trf.xlu0
  %v1692 = vpop.trf.xlu0
  %v1694 = vsel %vm351, %v1677, 0
  %v1697 = vsel %vm351, %v1678, 0
  %1699 = vmatprep.subr.mxu0 0.0
  %1700 = vmatpush1.msra.mxu0 %v1552
  %1701 = vmatprep.subr.mxu0 0.0
  %1702 = vmatpush1.msra.mxu0 %v1553
  %1703 = vmatprep.subr.mxu0 0.0
  %1704 = vmatpush1.msra.mxu0 %v1554
  %1705 = vmatprep.subr.mxu0 0.0
  %1706 = vmatpush1.msra.mxu0 %v1555
  %1707 = vmatprep.subr.mxu0 0.0
  %1708 = vmatpush1.msra.mxu0 0.0
  %1709 = vmatprep.subr.mxu0 0.0
  %1710 = vmatpush1.msra.mxu0 0.0
  %1711 = vmatprep.subr.mxu0 0.0
  %1712 = vmatpush1.msra.mxu0 0.0
  %1713 = vmatprep.subr.mxu0 0.0
  %1714 = vmatpush1.msra.mxu0 0.0
  %1715 = vmatprep.subr.mxu0 0.0
  %1716 = vmatpush1.msra.mxu0 0.0
  %1717 = vmatprep.subr.mxu0 0.0
  %1718 = vmatpush1.msra.mxu0 0.0
  %1719 = vmatprep.subr.mxu0 0.0
  %1720 = vmatpush1.msra.mxu0 0.0
  %1721 = vmatprep.subr.mxu0 0.0
  %1722 = vmatpush1.msra.mxu0 0.0
  %1723 = vmatprep.subr.mxu0 0.0
  %1724 = vmatpush1.msra.mxu0 0.0
  %1725 = vmatprep.subr.mxu0 0.0
  %1726 = vmatpush1.msra.mxu0 0.0
  %1727 = vmatprep.subr.mxu0 0.0
  %1728 = vmatpush1.msra.mxu0 0.0
  %1729 = vmatprep.subr.mxu0 0.0
  %1730 = vmatpush1.msra.mxu0 0.0
  %1731 = vmatprep.subr.mxu0 0.0
  %1732 = vmatpush1.msra.mxu0 0.0
  %1733 = vmatprep.subr.mxu0 0.0
  %1734 = vmatpush1.msra.mxu0 0.0
  %1735 = vmatprep.subr.mxu0 0.0
  %1736 = vmatpush1.msra.mxu0 0.0
  %1737 = vmatprep.subr.mxu0 0.0
  %1738 = vmatpush1.msra.mxu0 0.0
  %1739 = vmatprep.subr.mxu0 0.0
  %1740 = vmatpush1.msra.mxu0 0.0
  %1741 = vmatprep.subr.mxu0 0.0
  %1742 = vmatpush1.msra.mxu0 0.0
  %1743 = vmatprep.subr.mxu0 0.0
  %1744 = vmatpush1.msra.mxu0 0.0
  %1745 = vmatprep.subr.mxu0 0.0
  %1746 = vmatpush1.msra.mxu0 0.0
  %1747 = vmatprep.subr.mxu0 0.0
  %1748 = vmatpush1.msra.mxu0 0.0
  %1749 = vmatprep.subr.mxu0 0.0
  %1750 = vmatpush1.msra.mxu0 0.0
  %1751 = vmatprep.subr.mxu0 0.0
  %1752 = vmatpush1.msra.mxu0 0.0
  %1753 = vmatprep.subr.mxu0 0.0
  %1754 = vmatpush1.msra.mxu0 0.0
  %1755 = vmatprep.subr.mxu0 0.0
  %1756 = vmatpush1.msra.mxu0 0.0
  %1757 = vmatprep.subr.mxu0 0.0
  %1758 = vmatpush1.msra.mxu0 0.0
  %1759 = vmatprep.subr.mxu0 0.0
  %1760 = vmatpush1.msra.mxu0 0.0
  %1761 = vmatprep.subr.mxu0 0.0
  %1762 = vmatpush1.msra.mxu0 0.0
  %1763 = vmatprep.mubr.f32.mxu0 0.0
  %1764 = vmatmul.mubr.f32.gmra.mrb[0].mxu0 %v1694
  %v1765 = vpop.f32.mrb[0].mxu0
  %v1766 = vadd.f32 0.0, %v1765
  %v1767 = vpop.f32.mrb[0].mxu0
  %1768 = vmatprep.mubr.f32.mxu0 0.0
  %1769 = vmatmul.mubr.f32.gmra.mrb[0].mxu0 %v1697
  %v1770 = vpop.f32.mrb[0].mxu0
  %v1771 = vadd.f32 0.0, %v1770
  %v1772 = vpop.f32.mrb[0].mxu0
  %1773 = vdwg.mxu0
  %v1774 = vadd.f32 %v1401, %v1766
  %v1775 = vadd.f32 %v1402, %v1771
  %1776 = vxpose.xlu0.b32.start [1/16] %v1643, 128
  %1777 = vxpose.xlu0.b32.cont [2/16] %v1648, 128
  %1778 = vxpose.xlu0.b32.cont [3/16] %v1653, 128
  %1779 = vxpose.xlu0.b32.cont [4/16] %v1658, 128
  %1780 = vxpose.xlu0.b32.cont [5/16] 0.0, 128
  %1781 = vxpose.xlu0.b32.cont [6/16] 0.0, 128
  %1782 = vxpose.xlu0.b32.cont [7/16] 0.0, 128
  %1783 = vxpose.xlu0.b32.cont [8/16] 0.0, 128
  %1784 = vxpose.xlu0.b32.cont [9/16] 0.0, 128
  %1785 = vxpose.xlu0.b32.cont [10/16] 0.0, 128
  %1786 = vxpose.xlu0.b32.cont [11/16] 0.0, 128
  %1787 = vxpose.xlu0.b32.cont [12/16] 0.0, 128
  %1788 = vxpose.xlu0.b32.cont [13/16] 0.0, 128
  %1789 = vxpose.xlu0.b32.cont [14/16] 0.0, 128
  %1790 = vxpose.xlu0.b32.cont [15/16] 0.0, 128
  %1791 = vxpose.xlu0.b32.end [16/16] 0.0, 128
  %v1792 = vpop.trf.xlu0
  %v1793 = vpop.trf.xlu0
  %v1794 = vpop.trf.xlu0
  %v1795 = vpop.trf.xlu0
  %v1796 = vpop.trf.xlu0
  %v1797 = vpop.trf.xlu0
  %v1798 = vpop.trf.xlu0
  %v1799 = vpop.trf.xlu0
  %v1800 = vpop.trf.xlu0
  %v1801 = vpop.trf.xlu0
  %v1802 = vpop.trf.xlu0
  %v1803 = vpop.trf.xlu0
  %v1804 = vpop.trf.xlu0
  %v1805 = vpop.trf.xlu0
  %v1806 = vpop.trf.xlu0
  %v1807 = vpop.trf.xlu0
  %v1809 = vsel %vm351, %v1792, 0
  %v1812 = vsel %vm351, %v1793, 0
  %1814 = vmatprep.subr.mxu0 0.0
  %1815 = vmatpush1.msra.mxu0 %v1552
  %1816 = vmatprep.subr.mxu0 0.0
  %1817 = vmatpush1.msra.mxu0 %v1553
  %1818 = vmatprep.subr.mxu0 0.0
  %1819 = vmatpush1.msra.mxu0 %v1554
  %1820 = vmatprep.subr.mxu0 0.0
  %1821 = vmatpush1.msra.mxu0 %v1555
  %1822 = vmatprep.subr.mxu0 0.0
  %1823 = vmatpush1.msra.mxu0 0.0
  %1824 = vmatprep.subr.mxu0 0.0
  %1825 = vmatpush1.msra.mxu0 0.0
  %1826 = vmatprep.subr.mxu0 0.0
  %1827 = vmatpush1.msra.mxu0 0.0
  %1828 = vmatprep.subr.mxu0 0.0
  %1829 = vmatpush1.msra.mxu0 0.0
  %1830 = vmatprep.subr.mxu0 0.0
  %1831 = vmatpush1.msra.mxu0 0.0
  %1832 = vmatprep.subr.mxu0 0.0
  %1833 = vmatpush1.msra.mxu0 0.0
  %1834 = vmatprep.subr.mxu0 0.0
  %1835 = vmatpush1.msra.mxu0 0.0
  %1836 = vmatprep.subr.mxu0 0.0
  %1837 = vmatpush1.msra.mxu0 0.0
  %1838 = vmatprep.subr.mxu0 0.0
  %1839 = vmatpush1.msra.mxu0 0.0
  %1840 = vmatprep.subr.mxu0 0.0
  %1841 = vmatpush1.msra.mxu0 0.0
  %1842 = vmatprep.subr.mxu0 0.0
  %1843 = vmatpush1.msra.mxu0 0.0
  %1844 = vmatprep.subr.mxu0 0.0
  %1845 = vmatpush1.msra.mxu0 0.0
  %1846 = vmatprep.subr.mxu0 0.0
  %1847 = vmatpush1.msra.mxu0 0.0
  %1848 = vmatprep.subr.mxu0 0.0
  %1849 = vmatpush1.msra.mxu0 0.0
  %1850 = vmatprep.subr.mxu0 0.0
  %1851 = vmatpush1.msra.mxu0 0.0
  %1852 = vmatprep.subr.mxu0 0.0
  %1853 = vmatpush1.msra.mxu0 0.0
  %1854 = vmatprep.subr.mxu0 0.0
  %1855 = vmatpush1.msra.mxu0 0.0
  %1856 = vmatprep.subr.mxu0 0.0
  %1857 = vmatpush1.msra.mxu0 0.0
  %1858 = vmatprep.subr.mxu0 0.0
  %1859 = vmatpush1.msra.mxu0 0.0
  %1860 = vmatprep.subr.mxu0 0.0
  %1861 = vmatpush1.msra.mxu0 0.0
  %1862 = vmatprep.subr.mxu0 0.0
  %1863 = vmatpush1.msra.mxu0 0.0
  %1864 = vmatprep.subr.mxu0 0.0
  %1865 = vmatpush1.msra.mxu0 0.0
  %1866 = vmatprep.subr.mxu0 0.0
  %1867 = vmatpush1.msra.mxu0 0.0
  %1868 = vmatprep.subr.mxu0 0.0
  %1869 = vmatpush1.msra.mxu0 0.0
  %1870 = vmatprep.subr.mxu0 0.0
  %1871 = vmatpush1.msra.mxu0 0.0
  %1872 = vmatprep.subr.mxu0 0.0
  %1873 = vmatpush1.msra.mxu0 0.0
  %1874 = vmatprep.subr.mxu0 0.0
  %1875 = vmatpush1.msra.mxu0 0.0
  %1876 = vmatprep.subr.mxu0 0.0
  %1877 = vmatpush1.msra.mxu0 0.0
  %1878 = vmatprep.mubr.f32.mxu0 0.0
  %1879 = vmatmul.mubr.f32.gmra.mrb[0].mxu0 %v1809
  %v1880 = vpop.f32.mrb[0].mxu0
  %v1881 = vadd.f32 0.0, %v1880
  %v1882 = vpop.f32.mrb[0].mxu0
  %1883 = vmatprep.mubr.f32.mxu0 0.0
  %1884 = vmatmul.mubr.f32.gmra.mrb[0].mxu0 %v1812
  %v1885 = vpop.f32.mrb[0].mxu0
  %v1886 = vadd.f32 0.0, %v1885
  %v1887 = vpop.f32.mrb[0].mxu0
  %1888 = vdwg.mxu0
  %v1889 = vadd.f32 %v1516, %v1881
  %v1890 = vadd.f32 %v1517, %v1886
  %v1891 = vstv %s34
  %v1892 = vadd.f32 %v1774, %v1891
  %v1893 = vadd.f32 %v1775, %v1891
  %vm1894 = vcmask 113664
  %1895 = vst.msk [vmem:[%s4] sm:$0xff] %vm1894, %v1892
  %vm1896 = vcmask 111616
  %1897 = vst.msk [vmem:[%s4 + $0x8] sm:$0x3f] %vm1896, %v1893
  %v1898 = vadd.f32 %v1889, %v1891
  %v1899 = vadd.f32 %v1890, %v1891
  %s1900 = scalar_lea.vmem %s4, 16
  %1901 = vst.msk [vmem:[%s1900] sm:$0xff] %vm1894, %v1898
  %1902 = vst.msk [vmem:[%s1900 + $0x8] sm:$0x3f] %vm1896, %v1899
  // Predicated region
  $region18: #{model_forward.1} parent=0 // pred_check
    _
  $region19: #{model_forward.1} parent=0 // pred_check_branch
    %1904 = sbr.rel (0) target = $region21
  $region20: #{model_forward.1} parent=0 // pred_region
    _
  $region21: #{model_forward.1} parent=0 // pred_fallthru
    _
  // Predicated region
  $region22: #{model_forward.1} parent=0 // pred_check
    _
  $region23: #{model_forward.1} parent=0 // pred_check_branch
    %1906 = sbr.rel (0) target = $region25
  $region24: #{model_forward.1} parent=0 // pred_region
    _
  $region25: #{model_forward.1} parent=0 // pred_fallthru
    _

</llo_original>
